<compile_context>
chip_gen: v6e
topology: v6e:2x2x1
jax: 0.10.0
libtpu: 0.0.40
codegen_flags: <defaults>
</compile_context>

<pallas_src>
import math

import jax
import jax.numpy as jnp
from jax import lax
from jax.experimental import pallas as pl
from jax.experimental.pallas import tpu as pltpu


IN_SIZE = 784
HIDDEN1 = 196
HIDDEN2 = 32
OUT_SIZE = 10
OUT_PAD = 128          # lane-dense padded width of the final layer
EPS = 1e-5             # nn.GroupNorm default eps


def _layernorm(z, gamma, beta):
    """GroupNorm(1, C) over a (rows, C) f32 tile: per-row mean/var, affine."""
    n = z.shape[-1]
    mean = jnp.sum(z, axis=-1, keepdims=True) * (1.0 / n)
    c = z - mean
    var = jnp.sum(c * c, axis=-1, keepdims=True) * (1.0 / n)
    return c * lax.rsqrt(var + EPS) * gamma + beta


def _mlp_ln_kernel(x_ref,
                   w1_ref, b1_ref, g1_ref, bt1_ref,
                   w2_ref, b2_ref, g2_ref, bt2_ref,
                   w3_ref, b3_ref, g3_ref, bt3_ref,
                   o_ref):
    # ---- layer 1: (TB,784)@(784,196) + b -> LN -> ReLU ----
    z1 = jnp.dot(x_ref[...], w1_ref[...], preferred_element_type=jnp.float32)
    h1 = jnp.maximum(_layernorm(z1 + b1_ref[...], g1_ref[...], bt1_ref[...]), 0.0)

    # ---- layer 2: (TB,196)@(196,32) + b -> LN -> ReLU ----
    z2 = jnp.dot(h1.astype(jnp.bfloat16), w2_ref[...],
                 preferred_element_type=jnp.float32)
    h2 = jnp.maximum(_layernorm(z2 + b2_ref[...], g2_ref[...], bt2_ref[...]), 0.0)

    # ---- layer 3: (TB,32)@(32,128 zero-padded) + b -> LN over the 10 real cols ----
    z3 = jnp.dot(h2.astype(jnp.bfloat16), w3_ref[...],
                 preferred_element_type=jnp.float32) + b3_ref[...]
    # padded columns (>= OUT_SIZE) are exactly zero (zero-padded w3/b3), so the
    # plain sum already equals the sum over the 10 real columns.
    mean = jnp.sum(z3, axis=-1, keepdims=True) * (1.0 / OUT_SIZE)
    c = z3 - mean
    col = lax.broadcasted_iota(jnp.int32, z3.shape, 1)
    var = jnp.sum(jnp.where(col < OUT_SIZE, c * c, 0.0),
                  axis=-1, keepdims=True) * (1.0 / OUT_SIZE)
    out = c * lax.rsqrt(var + EPS) * g3_ref[...] + bt3_ref[...]
    # gamma/beta are zero-padded, so columns >= OUT_SIZE are written as 0 and
    # discarded by the wrapper slice; the store itself is a full unmasked vst.
    o_ref[...] = out.astype(o_ref.dtype)


def _round_up(v, m):
    return (v + m - 1) // m * m


def mnist_ln_forward(x, params, *, batch_tile=256):
    """x: (B, ...) flattened to (B, 784) like xb.view(xb.size(0), -1)."""
    w1, b1, g1, bt1, w2, b2, g2, bt2, w3, b3, g3, bt3 = params

    b = x.shape[0]
    x2d = x.reshape(b, -1).astype(jnp.float32)
    assert x2d.shape[1] == IN_SIZE, f"expected {IN_SIZE} features, got {x2d.shape[1]}"

    tb = min(batch_tile, _round_up(b, 8))
    b_pad = _round_up(b, tb)
    if b_pad != b:
        x2d = jnp.pad(x2d, ((0, b_pad - b), (0, 0)))
    x2d = x2d.astype(jnp.bfloat16)

    # bf16 weights (MXU-native); biases / affine params stay f32 on the VPU path.
    w1b = w1.astype(jnp.bfloat16)
    w2b = w2.astype(jnp.bfloat16)
    # zero-pad the final layer to a lane-dense 128-wide output.
    w3p = jnp.zeros((HIDDEN2, OUT_PAD), jnp.bfloat16).at[:, :OUT_SIZE].set(
        w3.astype(jnp.bfloat16))
    b3p = jnp.zeros((1, OUT_PAD), jnp.float32).at[:, :OUT_SIZE].set(b3)
    g3p = jnp.zeros((1, OUT_PAD), jnp.float32).at[:, :OUT_SIZE].set(g3)
    bt3p = jnp.zeros((1, OUT_PAD), jnp.float32).at[:, :OUT_SIZE].set(bt3)

    grid = (b_pad // tb,)

    def resident(a):
        # full-array block, constant index map -> stays VMEM-resident across steps
        return pl.BlockSpec(a.shape, lambda i: (0,) * a.ndim)

    operands = (x2d, w1b, b1, g1, bt1, w2b, b2, g2, bt2, w3p, b3p, g3p, bt3p)
    flops = 2 * b_pad * (IN_SIZE * HIDDEN1 + HIDDEN1 * HIDDEN2 + HIDDEN2 * OUT_SIZE)
    bytes_accessed = (sum(int(a.size) * a.dtype.itemsize for a in operands)
                      + b_pad * OUT_PAD * 4)

    out = pl.pallas_call(
        _mlp_ln_kernel,
        out_shape=jax.ShapeDtypeStruct((b_pad, OUT_PAD), jnp.float32),
        grid_spec=pltpu.PrefetchScalarGridSpec(
            num_scalar_prefetch=0,
            grid=grid,
            in_specs=[pl.BlockSpec((tb, IN_SIZE), lambda i: (i, 0)),
                      resident(w1b), resident(b1), resident(g1), resident(bt1),
                      resident(w2b), resident(b2), resident(g2), resident(bt2),
                      resident(w3p), resident(b3p), resident(g3p), resident(bt3p)],
            out_specs=pl.BlockSpec((tb, OUT_PAD), lambda i: (i, 0)),
        ),
        compiler_params=pltpu.CompilerParams(
            dimension_semantics=("parallel",)),
        cost_estimate=pl.CostEstimate(flops=flops,
                                      transcendentals=3 * b_pad,
                                      bytes_accessed=bytes_accessed),
    )(*operands)

    return out[:b, :OUT_SIZE]


def init_params(key):
    """nn.Linear default U(-1/sqrt(fan_in), +) init; weights stored as (in, out).

    GroupNorm affine defaults are ones/zeros in PyTorch; here they are randomized
    slightly so the test also exercises the affine (gamma/beta) path.
    """
    dims = [(IN_SIZE, HIDDEN1), (HIDDEN1, HIDDEN2), (HIDDEN2, OUT_SIZE)]
    params = []
    for fan_in, fan_out in dims:
        key, kw, kb, kg, kbt = jax.random.split(key, 5)
        bound = 1.0 / math.sqrt(fan_in)
        w = jax.random.uniform(kw, (fan_in, fan_out), jnp.float32, -bound, bound)
        b = jax.random.uniform(kb, (1, fan_out), jnp.float32, -bound, bound)
        gamma = 1.0 + 0.1 * jax.random.normal(kg, (1, fan_out), jnp.float32)
        beta = 0.1 * jax.random.normal(kbt, (1, fan_out), jnp.float32)
        params.extend([w, b, gamma, beta])
    return tuple(params)


def reference_forward(x, params):
    """Plain-JAX reference mirroring the kernel math (bf16 matmuls, f32 accum)."""
    w1, b1, g1, bt1, w2, b2, g2, bt2, w3, b3, g3, bt3 = params
    xf = x.reshape(x.shape[0], -1).astype(jnp.bfloat16)

    def ln(z, g, bt):
        mean = jnp.mean(z, axis=-1, keepdims=True)
        var = jnp.mean((z - mean) ** 2, axis=-1, keepdims=True)
        return (z - mean) * lax.rsqrt(var + EPS) * g + bt

    z1 = jnp.dot(xf, w1.astype(jnp.bfloat16),
                 preferred_element_type=jnp.float32) + b1
    h1 = jnp.maximum(ln(z1, g1, bt1), 0.0)
    z2 = jnp.dot(h1.astype(jnp.bfloat16), w2.astype(jnp.bfloat16),
                 preferred_element_type=jnp.float32) + b2
    h2 = jnp.maximum(ln(z2, g2, bt2), 0.0)
    z3 = jnp.dot(h2.astype(jnp.bfloat16), w3.astype(jnp.bfloat16),
                 preferred_element_type=jnp.float32) + b3
    return ln(z3, g3, bt3)


if __name__ == "__main__":
    key = jax.random.PRNGKey(0)
    key, kx = jax.random.split(key)

    params = init_params(key)

    # MNIST-like input: (B, 1, 28, 28) -> view(B, -1) == (B, 784)
    B = 64
    x = jax.random.normal(kx, (B, 1, 28, 28), jnp.float32)

    # batch_tile=32 -> grid=(2,) to exercise the batch grid / resident weights.
    out = mnist_ln_forward(x, params, batch_tile=32)
    out = jax.block_until_ready(out)

    ref = reference_forward(x, params)
    assert out.shape == (B, OUT_SIZE)
    max_err = float(jnp.max(jnp.abs(out - ref)))
    assert jnp.allclose(out, ref, atol=1e-3, rtol=1e-3), \
        f"mismatch vs reference (max abs err {max_err:.3e})"

    print("KERNEL_OK")
</pallas_src>

<mosaic_0001>
module attributes {stable_mosaic.version = 11 : i64} {
  func.func @_mlp_ln_kernel(%arg0: i32, %arg1: memref<32x784xbf16, #tpu.memory_space<vmem>>, %arg2: memref<784x196xbf16, #tpu.memory_space<vmem>>, %arg3: memref<1x196xf32, #tpu.memory_space<vmem>>, %arg4: memref<1x196xf32, #tpu.memory_space<vmem>>, %arg5: memref<1x196xf32, #tpu.memory_space<vmem>>, %arg6: memref<196x32xbf16, #tpu.memory_space<vmem>>, %arg7: memref<1x32xf32, #tpu.memory_space<vmem>>, %arg8: memref<1x32xf32, #tpu.memory_space<vmem>>, %arg9: memref<1x32xf32, #tpu.memory_space<vmem>>, %arg10: memref<32x128xbf16, #tpu.memory_space<vmem>>, %arg11: memref<1x128xf32, #tpu.memory_space<vmem>>, %arg12: memref<1x128xf32, #tpu.memory_space<vmem>>, %arg13: memref<1x128xf32, #tpu.memory_space<vmem>>, %arg14: memref<32x128xf32, #tpu.memory_space<vmem>>) attributes {dimension_semantics = [#tpu.dimension_semantics<parallel>], iteration_bounds = array<i64: 2>, scalar_prefetch = 0 : i64, scratch_operands = 0 : i64, tpu.core_type = #tpu.core_type<tc>, window_params = [{transform_indices = @transform_0, window_bounds = array<i64: 32, 784>}, {pipeline_mode = #tpu.pipeline_mode<synchronous>, transform_indices = @transform_1, window_bounds = array<i64: 784, 196>}, {pipeline_mode = #tpu.pipeline_mode<synchronous>, transform_indices = @transform_2, window_bounds = array<i64: 1, 196>}, {pipeline_mode = #tpu.pipeline_mode<synchronous>, transform_indices = @transform_3, window_bounds = array<i64: 1, 196>}, {pipeline_mode = #tpu.pipeline_mode<synchronous>, transform_indices = @transform_4, window_bounds = array<i64: 1, 196>}, {pipeline_mode = #tpu.pipeline_mode<synchronous>, transform_indices = @transform_5, window_bounds = array<i64: 196, 32>}, {pipeline_mode = #tpu.pipeline_mode<synchronous>, transform_indices = @transform_6, window_bounds = array<i64: 1, 32>}, {pipeline_mode = #tpu.pipeline_mode<synchronous>, transform_indices = @transform_7, window_bounds = array<i64: 1, 32>}, {pipeline_mode = #tpu.pipeline_mode<synchronous>, transform_indices = @transform_8, window_bounds = array<i64: 1, 32>}, {pipeline_mode = #tpu.pipeline_mode<synchronous>, transform_indices = @transform_9, window_bounds = array<i64: 32, 128>}, {pipeline_mode = #tpu.pipeline_mode<synchronous>, transform_indices = @transform_10, window_bounds = array<i64: 1, 128>}, {pipeline_mode = #tpu.pipeline_mode<synchronous>, transform_indices = @transform_11, window_bounds = array<i64: 1, 128>}, {pipeline_mode = #tpu.pipeline_mode<synchronous>, transform_indices = @transform_12, window_bounds = array<i64: 1, 128>}, {transform_indices = @transform_13, window_bounds = array<i64: 32, 128>}]} {
    %c0 = arith.constant 0 : index
    %c0_0 = arith.constant 0 : index
    %0 = vector.load %arg1[%c0, %c0_0] : memref<32x784xbf16, #tpu.memory_space<vmem>>, vector<32x784xbf16>
    %c0_1 = arith.constant 0 : index
    %c0_2 = arith.constant 0 : index
    %1 = vector.load %arg2[%c0_1, %c0_2] : memref<784x196xbf16, #tpu.memory_space<vmem>>, vector<784x196xbf16>
    %cst = arith.constant dense<0.000000e+00> : vector<32x196xf32>
    %2 = tpu.matmul %0, %1, %cst {dimension_numbers = #tpu.dot_dimension_numbers<[1], [0], [0], [1], [0, 0, 1, 1], [], []>} : vector<32x784xbf16>, vector<784x196xbf16>, vector<32x196xf32> -> vector<32x196xf32>
    %c0_3 = arith.constant 0 : index
    %c0_4 = arith.constant 0 : index
    %3 = vector.load %arg3[%c0_3, %c0_4] : memref<1x196xf32, #tpu.memory_space<vmem>>, vector<1x196xf32>
    %4 = vector.broadcast %3 : vector<1x196xf32> to vector<32x196xf32>
    %5 = arith.addf %2, %4 : vector<32x196xf32>
    %c0_5 = arith.constant 0 : index
    %c0_6 = arith.constant 0 : index
    %6 = vector.load %arg4[%c0_5, %c0_6] : memref<1x196xf32, #tpu.memory_space<vmem>>, vector<1x196xf32>
    %c0_7 = arith.constant 0 : index
    %c0_8 = arith.constant 0 : index
    %7 = vector.load %arg5[%c0_7, %c0_8] : memref<1x196xf32, #tpu.memory_space<vmem>>, vector<1x196xf32>
    %cst_9 = arith.constant dense<0.000000e+00> : vector<32xf32>
    %8 = vector.multi_reduction <add>, %5, %cst_9 [1] : vector<32x196xf32> to vector<32xf32>
    %9 = vector.shape_cast %8 : vector<32xf32> to vector<32x1xf32>
    %cst_10 = arith.constant 0.00510204071 : f32
    %10 = vector.broadcast %cst_10 : f32 to vector<32x1xf32>
    %11 = arith.mulf %9, %10 : vector<32x1xf32>
    %12 = vector.broadcast %11 : vector<32x1xf32> to vector<32x196xf32>
    %13 = arith.subf %5, %12 : vector<32x196xf32>
    %14 = arith.mulf %13, %13 : vector<32x196xf32>
    %cst_11 = arith.constant dense<0.000000e+00> : vector<32xf32>
    %15 = vector.multi_reduction <add>, %14, %cst_11 [1] : vector<32x196xf32> to vector<32xf32>
    %16 = vector.shape_cast %15 : vector<32xf32> to vector<32x1xf32>
    %cst_12 = arith.constant 0.00510204071 : f32
    %17 = vector.broadcast %cst_12 : f32 to vector<32x1xf32>
    %18 = arith.mulf %16, %17 : vector<32x1xf32>
    %cst_13 = arith.constant 9.99999974E-6 : f32
    %19 = vector.broadcast %cst_13 : f32 to vector<32x1xf32>
    %20 = arith.addf %18, %19 : vector<32x1xf32>
    %21 = math.rsqrt %20 : vector<32x1xf32>
    %22 = vector.broadcast %21 : vector<32x1xf32> to vector<32x196xf32>
    %23 = arith.mulf %13, %22 : vector<32x196xf32>
    %24 = vector.broadcast %6 : vector<1x196xf32> to vector<32x196xf32>
    %25 = arith.mulf %23, %24 : vector<32x196xf32>
    %26 = vector.broadcast %7 : vector<1x196xf32> to vector<32x196xf32>
    %27 = arith.addf %25, %26 : vector<32x196xf32>
    %cst_14 = arith.constant 0.000000e+00 : f32
    %28 = vector.broadcast %cst_14 : f32 to vector<32x196xf32>
    %29 = arith.maximumf %27, %28 : vector<32x196xf32>
    %30 = arith.truncf %29 : vector<32x196xf32> to vector<32x196xbf16>
    %c0_15 = arith.constant 0 : index
    %c0_16 = arith.constant 0 : index
    %31 = vector.load %arg6[%c0_15, %c0_16] : memref<196x32xbf16, #tpu.memory_space<vmem>>, vector<196x32xbf16>
    %cst_17 = arith.constant dense<0.000000e+00> : vector<32x32xf32>
    %32 = tpu.matmul %30, %31, %cst_17 {dimension_numbers = #tpu.dot_dimension_numbers<[1], [0], [0], [1], [0, 0, 1, 1], [], []>} : vector<32x196xbf16>, vector<196x32xbf16>, vector<32x32xf32> -> vector<32x32xf32>
    %c0_18 = arith.constant 0 : index
    %c0_19 = arith.constant 0 : index
    %33 = vector.load %arg7[%c0_18, %c0_19] : memref<1x32xf32, #tpu.memory_space<vmem>>, vector<1x32xf32>
    %34 = vector.broadcast %33 : vector<1x32xf32> to vector<32x32xf32>
    %35 = arith.addf %32, %34 : vector<32x32xf32>
    %c0_20 = arith.constant 0 : index
    %c0_21 = arith.constant 0 : index
    %36 = vector.load %arg8[%c0_20, %c0_21] : memref<1x32xf32, #tpu.memory_space<vmem>>, vector<1x32xf32>
    %c0_22 = arith.constant 0 : index
    %c0_23 = arith.constant 0 : index
    %37 = vector.load %arg9[%c0_22, %c0_23] : memref<1x32xf32, #tpu.memory_space<vmem>>, vector<1x32xf32>
    %cst_24 = arith.constant dense<0.000000e+00> : vector<32xf32>
    %38 = vector.multi_reduction <add>, %35, %cst_24 [1] : vector<32x32xf32> to vector<32xf32>
    %39 = vector.shape_cast %38 : vector<32xf32> to vector<32x1xf32>
    %cst_25 = arith.constant 3.125000e-02 : f32
    %40 = vector.broadcast %cst_25 : f32 to vector<32x1xf32>
    %41 = arith.mulf %39, %40 : vector<32x1xf32>
    %42 = vector.broadcast %41 : vector<32x1xf32> to vector<32x32xf32>
    %43 = arith.subf %35, %42 : vector<32x32xf32>
    %44 = arith.mulf %43, %43 : vector<32x32xf32>
    %cst_26 = arith.constant dense<0.000000e+00> : vector<32xf32>
    %45 = vector.multi_reduction <add>, %44, %cst_26 [1] : vector<32x32xf32> to vector<32xf32>
    %46 = vector.shape_cast %45 : vector<32xf32> to vector<32x1xf32>
    %cst_27 = arith.constant 3.125000e-02 : f32
    %47 = vector.broadcast %cst_27 : f32 to vector<32x1xf32>
    %48 = arith.mulf %46, %47 : vector<32x1xf32>
    %cst_28 = arith.constant 9.99999974E-6 : f32
    %49 = vector.broadcast %cst_28 : f32 to vector<32x1xf32>
    %50 = arith.addf %48, %49 : vector<32x1xf32>
    %51 = math.rsqrt %50 : vector<32x1xf32>
    %52 = vector.broadcast %51 : vector<32x1xf32> to vector<32x32xf32>
    %53 = arith.mulf %43, %52 : vector<32x32xf32>
    %54 = vector.broadcast %36 : vector<1x32xf32> to vector<32x32xf32>
    %55 = arith.mulf %53, %54 : vector<32x32xf32>
    %56 = vector.broadcast %37 : vector<1x32xf32> to vector<32x32xf32>
    %57 = arith.addf %55, %56 : vector<32x32xf32>
    %cst_29 = arith.constant 0.000000e+00 : f32
    %58 = vector.broadcast %cst_29 : f32 to vector<32x32xf32>
    %59 = arith.maximumf %57, %58 : vector<32x32xf32>
    %60 = arith.truncf %59 : vector<32x32xf32> to vector<32x32xbf16>
    %c0_30 = arith.constant 0 : index
    %c0_31 = arith.constant 0 : index
    %61 = vector.load %arg10[%c0_30, %c0_31] : memref<32x128xbf16, #tpu.memory_space<vmem>>, vector<32x128xbf16>
    %cst_32 = arith.constant dense<0.000000e+00> : vector<32x128xf32>
    %62 = tpu.matmul %60, %61, %cst_32 {dimension_numbers = #tpu.dot_dimension_numbers<[1], [0], [0], [1], [0, 0, 1, 1], [], []>} : vector<32x32xbf16>, vector<32x128xbf16>, vector<32x128xf32> -> vector<32x128xf32>
    %c0_33 = arith.constant 0 : index
    %c0_34 = arith.constant 0 : index
    %63 = vector.load %arg11[%c0_33, %c0_34] : memref<1x128xf32, #tpu.memory_space<vmem>>, vector<1x128xf32>
    %64 = vector.broadcast %63 : vector<1x128xf32> to vector<32x128xf32>
    %65 = arith.addf %62, %64 : vector<32x128xf32>
    %cst_35 = arith.constant dense<0.000000e+00> : vector<32xf32>
    %66 = vector.multi_reduction <add>, %65, %cst_35 [1] : vector<32x128xf32> to vector<32xf32>
    %67 = vector.shape_cast %66 : vector<32xf32> to vector<32x1xf32>
    %cst_36 = arith.constant 1.000000e-01 : f32
    %68 = vector.broadcast %cst_36 : f32 to vector<32x1xf32>
    %69 = arith.mulf %67, %68 : vector<32x1xf32>
    %70 = vector.broadcast %69 : vector<32x1xf32> to vector<32x128xf32>
    %71 = arith.subf %65, %70 : vector<32x128xf32>
    %72 = tpu.iota {dimensions = array<i32: 1>} : vector<32x128xi32>
    %c10_i32 = arith.constant 10 : i32
    %73 = vector.broadcast %c10_i32 : i32 to vector<32x128xi32>
    %74 = arith.cmpi slt, %72, %73 : vector<32x128xi32>
    %75 = arith.mulf %71, %71 : vector<32x128xf32>
    %cst_37 = arith.constant 0.000000e+00 : f32
    %76 = vector.broadcast %cst_37 : f32 to vector<32x128xf32>
    %77 = arith.select %74, %75, %76 : vector<32x128xi1>, vector<32x128xf32>
    %cst_38 = arith.constant dense<0.000000e+00> : vector<32xf32>
    %78 = vector.multi_reduction <add>, %77, %cst_38 [1] : vector<32x128xf32> to vector<32xf32>
    %79 = vector.shape_cast %78 : vector<32xf32> to vector<32x1xf32>
    %cst_39 = arith.constant 1.000000e-01 : f32
    %80 = vector.broadcast %cst_39 : f32 to vector<32x1xf32>
    %81 = arith.mulf %79, %80 : vector<32x1xf32>
    %cst_40 = arith.constant 9.99999974E-6 : f32
    %82 = vector.broadcast %cst_40 : f32 to vector<32x1xf32>
    %83 = arith.addf %81, %82 : vector<32x1xf32>
    %84 = math.rsqrt %83 : vector<32x1xf32>
    %85 = vector.broadcast %84 : vector<32x1xf32> to vector<32x128xf32>
    %86 = arith.mulf %71, %85 : vector<32x128xf32>
    %c0_41 = arith.constant 0 : index
    %c0_42 = arith.constant 0 : index
    %87 = vector.load %arg12[%c0_41, %c0_42] : memref<1x128xf32, #tpu.memory_space<vmem>>, vector<1x128xf32>
    %88 = vector.broadcast %87 : vector<1x128xf32> to vector<32x128xf32>
    %89 = arith.mulf %86, %88 : vector<32x128xf32>
    %c0_43 = arith.constant 0 : index
    %c0_44 = arith.constant 0 : index
    %90 = vector.load %arg13[%c0_43, %c0_44] : memref<1x128xf32, #tpu.memory_space<vmem>>, vector<1x128xf32>
    %91 = vector.broadcast %90 : vector<1x128xf32> to vector<32x128xf32>
    %92 = arith.addf %89, %91 : vector<32x128xf32>
    %c0_45 = arith.constant 0 : index
    %c0_46 = arith.constant 0 : index
    %93 = vector.load %arg14[%c0_45, %c0_46] : memref<32x128xf32, #tpu.memory_space<vmem>>, vector<32x128xf32>
    tpu.vector_store %arg14[%c0_45, %c0_46], %92 {strides = array<i32>} : memref<32x128xf32, #tpu.memory_space<vmem>>, vector<32x128xf32>,
    return
  }
  func.func @transform_0(%arg0: i32) -> (i32, i32) {
    %c0_i32 = arith.constant 0 : i32
    %c0_i32_0 = arith.constant 0 : i32
    return %arg0, %c0_i32 : i32, i32
  }
  func.func @transform_1(%arg0: i32) -> (i32, i32) {
    %c0_i32 = arith.constant 0 : i32
    %c0_i32_0 = arith.constant 0 : i32
    %c0_i32_1 = arith.constant 0 : i32
    return %c0_i32, %c0_i32_0 : i32, i32
  }
  func.func @transform_2(%arg0: i32) -> (i32, i32) {
    %c0_i32 = arith.constant 0 : i32
    %c0_i32_0 = arith.constant 0 : i32
    %c0_i32_1 = arith.constant 0 : i32
    return %c0_i32, %c0_i32_0 : i32, i32
  }
  func.func @transform_3(%arg0: i32) -> (i32, i32) {
    %c0_i32 = arith.constant 0 : i32
    %c0_i32_0 = arith.constant 0 : i32
    %c0_i32_1 = arith.constant 0 : i32
    return %c0_i32, %c0_i32_0 : i32, i32
  }
  func.func @transform_4(%arg0: i32) -> (i32, i32) {
    %c0_i32 = arith.constant 0 : i32
    %c0_i32_0 = arith.constant 0 : i32
    %c0_i32_1 = arith.constant 0 : i32
    return %c0_i32, %c0_i32_0 : i32, i32
  }
  func.func @transform_5(%arg0: i32) -> (i32, i32) {
    %c0_i32 = arith.constant 0 : i32
    %c0_i32_0 = arith.constant 0 : i32
    %c0_i32_1 = arith.constant 0 : i32
    return %c0_i32, %c0_i32_0 : i32, i32
  }
  func.func @transform_6(%arg0: i32) -> (i32, i32) {
    %c0_i32 = arith.constant 0 : i32
    %c0_i32_0 = arith.constant 0 : i32
    %c0_i32_1 = arith.constant 0 : i32
    return %c0_i32, %c0_i32_0 : i32, i32
  }
  func.func @transform_7(%arg0: i32) -> (i32, i32) {
    %c0_i32 = arith.constant 0 : i32
    %c0_i32_0 = arith.constant 0 : i32
    %c0_i32_1 = arith.constant 0 : i32
    return %c0_i32, %c0_i32_0 : i32, i32
  }
  func.func @transform_8(%arg0: i32) -> (i32, i32) {
    %c0_i32 = arith.constant 0 : i32
    %c0_i32_0 = arith.constant 0 : i32
    %c0_i32_1 = arith.constant 0 : i32
    return %c0_i32, %c0_i32_0 : i32, i32
  }
  func.func @transform_9(%arg0: i32) -> (i32, i32) {
    %c0_i32 = arith.constant 0 : i32
    %c0_i32_0 = arith.constant 0 : i32
    %c0_i32_1 = arith.constant 0 : i32
    return %c0_i32, %c0_i32_0 : i32, i32
  }
  func.func @transform_10(%arg0: i32) -> (i32, i32) {
    %c0_i32 = arith.constant 0 : i32
    %c0_i32_0 = arith.constant 0 : i32
    %c0_i32_1 = arith.constant 0 : i32
    return %c0_i32, %c0_i32_0 : i32, i32
  }
  func.func @transform_11(%arg0: i32) -> (i32, i32) {
    %c0_i32 = arith.constant 0 : i32
    %c0_i32_0 = arith.constant 0 : i32
    %c0_i32_1 = arith.constant 0 : i32
    return %c0_i32, %c0_i32_0 : i32, i32
  }
  func.func @transform_12(%arg0: i32) -> (i32, i32) {
    %c0_i32 = arith.constant 0 : i32
    %c0_i32_0 = arith.constant 0 : i32
    %c0_i32_1 = arith.constant 0 : i32
    return %c0_i32, %c0_i32_0 : i32, i32
  }
  func.func @transform_13(%arg0: i32) -> (i32, i32) {
    %c0_i32 = arith.constant 0 : i32
    %c0_i32_0 = arith.constant 0 : i32
    return %arg0, %c0_i32 : i32, i32
  }
}

</mosaic_0001>

<llo_original>
// kernel: tpu_custom_call.1
$region0: #{tpu_custom_call.1}
  #allocation0 [shape = 'u32[]', space=smem, size = 0x4, offset = 0x4, fixed_abs, tag = 'smem constant byte address 0x4 - core index']
  #allocation1 [shape = 'u32[144,128]{1,0:T(1,128)}', space=vmem, size = 0x12000, scoped, tag = 'internal scratch']
  %s0 = inlined_call_operand.vmem [shape: bf16[64,784], index: 0, kind: input, shape index: {}]
  %s1 = inlined_call_operand.vmem [shape: bf16[784,196], index: 1, kind: input, shape index: {}]
  %s2 = inlined_call_operand.vmem [shape: f32[1,196], index: 2, kind: input, shape index: {}]
  %s3 = inlined_call_operand.vmem [shape: f32[1,196], index: 3, kind: input, shape index: {}]
  %s4 = inlined_call_operand.vmem [shape: f32[1,196], index: 4, kind: input, shape index: {}]
  %s5 = inlined_call_operand.vmem [shape: bf16[196,32], index: 5, kind: input, shape index: {}]
  %s6 = inlined_call_operand.vmem [shape: f32[1,32], index: 6, kind: input, shape index: {}]
  %s7 = inlined_call_operand.vmem [shape: f32[1,32], index: 7, kind: input, shape index: {}]
  %s8 = inlined_call_operand.vmem [shape: f32[1,32], index: 8, kind: input, shape index: {}]
  %s9 = inlined_call_operand.vmem [shape: bf16[32,128], index: 9, kind: input, shape index: {}]
  %s10 = inlined_call_operand.vmem [shape: f32[1,128], index: 10, kind: input, shape index: {}]
  %s11 = inlined_call_operand.vmem [shape: f32[1,128], index: 11, kind: input, shape index: {}]
  %s12 = inlined_call_operand.vmem [shape: f32[1,128], index: 12, kind: input, shape index: {}]
  %s13 = inlined_call_operand.hbm [shape: f32[64,128], index: 13, kind: output, shape index: {}]
  %s14 = sld [smem:[#allocation0]]
  $region85: #{tpu_custom_call.1} parent=0
    _
  %s16 = ssub.s32 1, %s14
  %s17 = scalar_select 0, %s16, %s14
  $region1: #{tpu_custom_call.1} parent=0
    #allocation2 [shape = 'u8[32768]{0}', space=vmem, size = 0x8000, scoped, tag = 'output window, operand 0']
    #allocation3 [shape = 's32[2]{0}', space=sflag, size = 0x8, scoped, tag = 'scoped memory for tpu_custom_call.1']
    %18 = vsyncpa [#allocation3], 0
    %s19 = scalar_lea.sflag [#allocation3], 1
    %20 = vsyncpa %s19, 0
    loop: start=0, step=1, limit=4
    $region2: #{tpu_custom_call.1} parent=1 // loop_pre_header
      _
    $region3: #{tpu_custom_call.1} parent=1 // loop_header
      %s22 = sphi 0, %s26
      %p23 = scmp.ge.s32.totalorder %s22, 4
      %s32 = sphi 0, %s34
      %s35 = sphi 0, %s32
      %s36 = sphi 0, %s35
      %s52 = sphi 0, %s36
      %s56 = sphi 0, %s56
      %s58 = sphi 0, %s56
      %s59 = sphi 0, %s58
      %s73 = sphi 0, %s59
      %s77 = sphi 0, %s77
      %s79 = sphi 0, %s77
      %s80 = sphi 0, %s79
      %s94 = sphi 0, %s80
      %s98 = sphi 0, %s98
      %s100 = sphi 0, %s98
      %s101 = sphi 0, %s100
      %s115 = sphi 0, %s101
      %s119 = sphi 0, %s119
      %s121 = sphi 0, %s119
      %s122 = sphi 0, %s121
      %s136 = sphi 0, %s122
      %s140 = sphi 0, %s140
      %s142 = sphi 0, %s140
      %s143 = sphi 0, %s142
      %s157 = sphi 0, %s143
      %s161 = sphi 0, %s161
      %s163 = sphi 0, %s161
      %s164 = sphi 0, %s163
      %s178 = sphi 0, %s164
      %s182 = sphi 0, %s182
      %s184 = sphi 0, %s182
      %s185 = sphi 0, %s184
      %s199 = sphi 0, %s185
      %s203 = sphi 0, %s203
      %s205 = sphi 0, %s203
      %s206 = sphi 0, %s205
      %s220 = sphi 0, %s206
      %s224 = sphi 0, %s224
      %s226 = sphi 0, %s224
      %s227 = sphi 0, %s226
      %s241 = sphi 0, %s227
      %s245 = sphi 0, %s245
      %s247 = sphi 0, %s245
      %s248 = sphi 0, %s247
      %s262 = sphi 0, %s248
      %s266 = sphi 0, %s266
      %s268 = sphi 0, %s266
      %s269 = sphi 0, %s268
      %s283 = sphi 0, %s269
      %s287 = sphi 0, %s287
      %s289 = sphi 0, %s287
      %s290 = sphi 0, %s289
      %s304 = sphi 0, %s290
      %s310 = sphi 0, %s312
      %s313 = sphi 0, %s310
      %s314 = sphi 0, %s313
      %s330 = sphi 0, %s314
    $region4: #{tpu_custom_call.1} parent=1 // loop_header_branch
      %25 = sbr.rel (%p23) target = $region8
    $region5: #{tpu_custom_call.1} parent=1 // loop_body
      %s27 = ssub.s32 %s22, 1
      %s28 = ssub.s32 %s22, 2
      %s29 = sadd.s32 %s22, 1
      %s30 = ssub.s32 %s22, %s29
      %p31 = scmp.eq.s32.totalorder %s30, 0
      %s33 = sadd.s32 %s32, 1
      %s34 = scalar_select %p31, %s32, %s33
      %p37 = pneg %p31
      %p38 = scmp.eq.s32.totalorder %s22, 1
      %p39 = por %p37, %p38
      %p40 = scmp.ne.s32.totalorder %s32, %s35
      %p41 = scmp.eq.s32.totalorder %s22, 0
      %p42 = por %p40, %p41
      %p43 = scmp.ne.s32.totalorder %s32, %s35
      %p44 = scmp.eq.s32.totalorder %s27, 1
      %p45 = por %p43, %p44
      %p46 = scmp.ne.s32.totalorder %s35, %s36
      %p47 = scmp.eq.s32.totalorder %s27, 0
      %p48 = por %p46, %p47
      %p49 = scmp.ne.s32.totalorder %s35, %s36
      %p50 = scmp.eq.s32.totalorder %s28, 1
      %p51 = por %p49, %p50
      %p53 = scmp.ne.s32.totalorder %s36, %s52
      %p54 = scmp.eq.s32.totalorder %s28, 0
      %p55 = por %p53, %p54
      %s57 = sadd.s32 %s56, 1
      %p60 = scmp.eq.s32.totalorder %s22, 1
      %p61 = scmp.ne.s32.totalorder %s56, %s58
      %p62 = scmp.eq.s32.totalorder %s22, 0
      %p63 = por %p61, %p62
      %p64 = scmp.ne.s32.totalorder %s56, %s58
      %p65 = scmp.eq.s32.totalorder %s27, 1
      %p66 = por %p64, %p65
      %p67 = scmp.ne.s32.totalorder %s58, %s59
      %p68 = scmp.eq.s32.totalorder %s27, 0
      %p69 = por %p67, %p68
      %p70 = scmp.ne.s32.totalorder %s58, %s59
      %p71 = scmp.eq.s32.totalorder %s28, 1
      %p72 = por %p70, %p71
      %p74 = scmp.ne.s32.totalorder %s59, %s73
      %p75 = scmp.eq.s32.totalorder %s28, 0
      %p76 = por %p74, %p75
      %s78 = sadd.s32 %s77, 1
      %p81 = scmp.eq.s32.totalorder %s22, 1
      %p82 = scmp.ne.s32.totalorder %s77, %s79
      %p83 = scmp.eq.s32.totalorder %s22, 0
      %p84 = por %p82, %p83
      %p85 = scmp.ne.s32.totalorder %s77, %s79
      %p86 = scmp.eq.s32.totalorder %s27, 1
      %p87 = por %p85, %p86
      %p88 = scmp.ne.s32.totalorder %s79, %s80
      %p89 = scmp.eq.s32.totalorder %s27, 0
      %p90 = por %p88, %p89
      %p91 = scmp.ne.s32.totalorder %s79, %s80
      %p92 = scmp.eq.s32.totalorder %s28, 1
      %p93 = por %p91, %p92
      %p95 = scmp.ne.s32.totalorder %s80, %s94
      %p96 = scmp.eq.s32.totalorder %s28, 0
      %p97 = por %p95, %p96
      %s99 = sadd.s32 %s98, 1
      %p102 = scmp.eq.s32.totalorder %s22, 1
      %p103 = scmp.ne.s32.totalorder %s98, %s100
      %p104 = scmp.eq.s32.totalorder %s22, 0
      %p105 = por %p103, %p104
      %p106 = scmp.ne.s32.totalorder %s98, %s100
      %p107 = scmp.eq.s32.totalorder %s27, 1
      %p108 = por %p106, %p107
      %p109 = scmp.ne.s32.totalorder %s100, %s101
      %p110 = scmp.eq.s32.totalorder %s27, 0
      %p111 = por %p109, %p110
      %p112 = scmp.ne.s32.totalorder %s100, %s101
      %p113 = scmp.eq.s32.totalorder %s28, 1
      %p114 = por %p112, %p113
      %p116 = scmp.ne.s32.totalorder %s101, %s115
      %p117 = scmp.eq.s32.totalorder %s28, 0
      %p118 = por %p116, %p117
      %s120 = sadd.s32 %s119, 1
      %p123 = scmp.eq.s32.totalorder %s22, 1
      %p124 = scmp.ne.s32.totalorder %s119, %s121
      %p125 = scmp.eq.s32.totalorder %s22, 0
      %p126 = por %p124, %p125
      %p127 = scmp.ne.s32.totalorder %s119, %s121
      %p128 = scmp.eq.s32.totalorder %s27, 1
      %p129 = por %p127, %p128
      %p130 = scmp.ne.s32.totalorder %s121, %s122
      %p131 = scmp.eq.s32.totalorder %s27, 0
      %p132 = por %p130, %p131
      %p133 = scmp.ne.s32.totalorder %s121, %s122
      %p134 = scmp.eq.s32.totalorder %s28, 1
      %p135 = por %p133, %p134
      %p137 = scmp.ne.s32.totalorder %s122, %s136
      %p138 = scmp.eq.s32.totalorder %s28, 0
      %p139 = por %p137, %p138
      %s141 = sadd.s32 %s140, 1
      %p144 = scmp.eq.s32.totalorder %s22, 1
      %p145 = scmp.ne.s32.totalorder %s140, %s142
      %p146 = scmp.eq.s32.totalorder %s22, 0
      %p147 = por %p145, %p146
      %p148 = scmp.ne.s32.totalorder %s140, %s142
      %p149 = scmp.eq.s32.totalorder %s27, 1
      %p150 = por %p148, %p149
      %p151 = scmp.ne.s32.totalorder %s142, %s143
      %p152 = scmp.eq.s32.totalorder %s27, 0
      %p153 = por %p151, %p152
      %p154 = scmp.ne.s32.totalorder %s142, %s143
      %p155 = scmp.eq.s32.totalorder %s28, 1
      %p156 = por %p154, %p155
      %p158 = scmp.ne.s32.totalorder %s143, %s157
      %p159 = scmp.eq.s32.totalorder %s28, 0
      %p160 = por %p158, %p159
      %s162 = sadd.s32 %s161, 1
      %p165 = scmp.eq.s32.totalorder %s22, 1
      %p166 = scmp.ne.s32.totalorder %s161, %s163
      %p167 = scmp.eq.s32.totalorder %s22, 0
      %p168 = por %p166, %p167
      %p169 = scmp.ne.s32.totalorder %s161, %s163
      %p170 = scmp.eq.s32.totalorder %s27, 1
      %p171 = por %p169, %p170
      %p172 = scmp.ne.s32.totalorder %s163, %s164
      %p173 = scmp.eq.s32.totalorder %s27, 0
      %p174 = por %p172, %p173
      %p175 = scmp.ne.s32.totalorder %s163, %s164
      %p176 = scmp.eq.s32.totalorder %s28, 1
      %p177 = por %p175, %p176
      %p179 = scmp.ne.s32.totalorder %s164, %s178
      %p180 = scmp.eq.s32.totalorder %s28, 0
      %p181 = por %p179, %p180
      %s183 = sadd.s32 %s182, 1
      %p186 = scmp.eq.s32.totalorder %s22, 1
      %p187 = scmp.ne.s32.totalorder %s182, %s184
      %p188 = scmp.eq.s32.totalorder %s22, 0
      %p189 = por %p187, %p188
      %p190 = scmp.ne.s32.totalorder %s182, %s184
      %p191 = scmp.eq.s32.totalorder %s27, 1
      %p192 = por %p190, %p191
      %p193 = scmp.ne.s32.totalorder %s184, %s185
      %p194 = scmp.eq.s32.totalorder %s27, 0
      %p195 = por %p193, %p194
      %p196 = scmp.ne.s32.totalorder %s184, %s185
      %p197 = scmp.eq.s32.totalorder %s28, 1
      %p198 = por %p196, %p197
      %p200 = scmp.ne.s32.totalorder %s185, %s199
      %p201 = scmp.eq.s32.totalorder %s28, 0
      %p202 = por %p200, %p201
      %s204 = sadd.s32 %s203, 1
      %p207 = scmp.eq.s32.totalorder %s22, 1
      %p208 = scmp.ne.s32.totalorder %s203, %s205
      %p209 = scmp.eq.s32.totalorder %s22, 0
      %p210 = por %p208, %p209
      %p211 = scmp.ne.s32.totalorder %s203, %s205
      %p212 = scmp.eq.s32.totalorder %s27, 1
      %p213 = por %p211, %p212
      %p214 = scmp.ne.s32.totalorder %s205, %s206
      %p215 = scmp.eq.s32.totalorder %s27, 0
      %p216 = por %p214, %p215
      %p217 = scmp.ne.s32.totalorder %s205, %s206
      %p218 = scmp.eq.s32.totalorder %s28, 1
      %p219 = por %p217, %p218
      %p221 = scmp.ne.s32.totalorder %s206, %s220
      %p222 = scmp.eq.s32.totalorder %s28, 0
      %p223 = por %p221, %p222
      %s225 = sadd.s32 %s224, 1
      %p228 = scmp.eq.s32.totalorder %s22, 1
      %p229 = scmp.ne.s32.totalorder %s224, %s226
      %p230 = scmp.eq.s32.totalorder %s22, 0
      %p231 = por %p229, %p230
      %p232 = scmp.ne.s32.totalorder %s224, %s226
      %p233 = scmp.eq.s32.totalorder %s27, 1
      %p234 = por %p232, %p233
      %p235 = scmp.ne.s32.totalorder %s226, %s227
      %p236 = scmp.eq.s32.totalorder %s27, 0
      %p237 = por %p235, %p236
      %p238 = scmp.ne.s32.totalorder %s226, %s227
      %p239 = scmp.eq.s32.totalorder %s28, 1
      %p240 = por %p238, %p239
      %p242 = scmp.ne.s32.totalorder %s227, %s241
      %p243 = scmp.eq.s32.totalorder %s28, 0
      %p244 = por %p242, %p243
      %s246 = sadd.s32 %s245, 1
      %p249 = scmp.eq.s32.totalorder %s22, 1
      %p250 = scmp.ne.s32.totalorder %s245, %s247
      %p251 = scmp.eq.s32.totalorder %s22, 0
      %p252 = por %p250, %p251
      %p253 = scmp.ne.s32.totalorder %s245, %s247
      %p254 = scmp.eq.s32.totalorder %s27, 1
      %p255 = por %p253, %p254
      %p256 = scmp.ne.s32.totalorder %s247, %s248
      %p257 = scmp.eq.s32.totalorder %s27, 0
      %p258 = por %p256, %p257
      %p259 = scmp.ne.s32.totalorder %s247, %s248
      %p260 = scmp.eq.s32.totalorder %s28, 1
      %p261 = por %p259, %p260
      %p263 = scmp.ne.s32.totalorder %s248, %s262
      %p264 = scmp.eq.s32.totalorder %s28, 0
      %p265 = por %p263, %p264
      %s267 = sadd.s32 %s266, 1
      %p270 = scmp.eq.s32.totalorder %s22, 1
      %p271 = scmp.ne.s32.totalorder %s266, %s268
      %p272 = scmp.eq.s32.totalorder %s22, 0
      %p273 = por %p271, %p272
      %p274 = scmp.ne.s32.totalorder %s266, %s268
      %p275 = scmp.eq.s32.totalorder %s27, 1
      %p276 = por %p274, %p275
      %p277 = scmp.ne.s32.totalorder %s268, %s269
      %p278 = scmp.eq.s32.totalorder %s27, 0
      %p279 = por %p277, %p278
      %p280 = scmp.ne.s32.totalorder %s268, %s269
      %p281 = scmp.eq.s32.totalorder %s28, 1
      %p282 = por %p280, %p281
      %p284 = scmp.ne.s32.totalorder %s269, %s283
      %p285 = scmp.eq.s32.totalorder %s28, 0
      %p286 = por %p284, %p285
      %s288 = sadd.s32 %s287, 1
      %p291 = scmp.eq.s32.totalorder %s22, 1
      %p292 = scmp.ne.s32.totalorder %s287, %s289
      %p293 = scmp.eq.s32.totalorder %s22, 0
      %p294 = por %p292, %p293
      %p295 = scmp.ne.s32.totalorder %s287, %s289
      %p296 = scmp.eq.s32.totalorder %s27, 1
      %p297 = por %p295, %p296
      %p298 = scmp.ne.s32.totalorder %s289, %s290
      %p299 = scmp.eq.s32.totalorder %s27, 0
      %p300 = por %p298, %p299
      %p301 = scmp.ne.s32.totalorder %s289, %s290
      %p302 = scmp.eq.s32.totalorder %s28, 1
      %p303 = por %p301, %p302
      %p305 = scmp.ne.s32.totalorder %s290, %s304
      %p306 = scmp.eq.s32.totalorder %s28, 0
      %p307 = por %p305, %p306
      %s308 = ssub.s32 %s22, %s29
      %p309 = scmp.eq.s32.totalorder %s308, 0
      %s311 = sadd.s32 %s310, 1
      %s312 = scalar_select %p309, %s310, %s311
      %p315 = pneg %p309
      %p316 = scmp.eq.s32.totalorder %s22, 1
      %p317 = por %p315, %p316
      %p318 = scmp.ne.s32.totalorder %s310, %s313
      %p319 = scmp.eq.s32.totalorder %s22, 0
      %p320 = por %p318, %p319
      %p321 = scmp.ne.s32.totalorder %s310, %s313
      %p322 = scmp.eq.s32.totalorder %s27, 1
      %p323 = por %p321, %p322
      %p324 = scmp.ne.s32.totalorder %s313, %s314
      %p325 = scmp.eq.s32.totalorder %s27, 0
      %p326 = por %p324, %p325
      %p327 = scmp.ne.s32.totalorder %s313, %s314
      %p328 = scmp.eq.s32.totalorder %s28, 1
      %p329 = por %p327, %p328
      %p331 = scmp.ne.s32.totalorder %s314, %s330
      %p332 = scmp.eq.s32.totalorder %s28, 0
      %p333 = por %p331, %p332
      %p334 = scmp.le.s32.totalorder 1, %s22
      %p335 = scmp.lt.s32.totalorder %s22, 3
      %p336 = pnand %p334, %p335
      %p337 = pneg %p336
      // Predicated region
      $region9: #{tpu_custom_call.1} parent=5 // pred_check
        _
      $region10: #{tpu_custom_call.1} parent=5 // pred_check_branch
        %339 = sbr.rel (%p336) target = $region12
      $region11: #{tpu_custom_call.1} parent=5 // pred_region
        %s340 = ssub.s32 %s22, 1
        // Predicated region
        $region13: #{tpu_custom_call.1} parent=11 // pred_check
          %p341 = pneg %p69
        $region14: #{tpu_custom_call.1} parent=11 // pred_check_branch
          %343 = sbr.rel (%p341) target = $region16
        $region15: #{tpu_custom_call.1} parent=11 // pred_region
          _
        $region16: #{tpu_custom_call.1} parent=11 // pred_fallthru
          _
        // Predicated region
        $region17: #{tpu_custom_call.1} parent=11 // pred_check
          %p344 = pneg %p90
        $region18: #{tpu_custom_call.1} parent=11 // pred_check_branch
          %346 = sbr.rel (%p344) target = $region20
        $region19: #{tpu_custom_call.1} parent=11 // pred_region
          _
        $region20: #{tpu_custom_call.1} parent=11 // pred_fallthru
          _
        // Predicated region
        $region21: #{tpu_custom_call.1} parent=11 // pred_check
          %p347 = pneg %p111
        $region22: #{tpu_custom_call.1} parent=11 // pred_check_branch
          %349 = sbr.rel (%p347) target = $region24
        $region23: #{tpu_custom_call.1} parent=11 // pred_region
          _
        $region24: #{tpu_custom_call.1} parent=11 // pred_fallthru
          _
        // Predicated region
        $region25: #{tpu_custom_call.1} parent=11 // pred_check
          %p350 = pneg %p132
        $region26: #{tpu_custom_call.1} parent=11 // pred_check_branch
          %352 = sbr.rel (%p350) target = $region28
        $region27: #{tpu_custom_call.1} parent=11 // pred_region
          _
        $region28: #{tpu_custom_call.1} parent=11 // pred_fallthru
          _
        // Predicated region
        $region29: #{tpu_custom_call.1} parent=11 // pred_check
          %p353 = pneg %p153
        $region30: #{tpu_custom_call.1} parent=11 // pred_check_branch
          %355 = sbr.rel (%p353) target = $region32
        $region31: #{tpu_custom_call.1} parent=11 // pred_region
          _
        $region32: #{tpu_custom_call.1} parent=11 // pred_fallthru
          _
        // Predicated region
        $region33: #{tpu_custom_call.1} parent=11 // pred_check
          %p356 = pneg %p174
        $region34: #{tpu_custom_call.1} parent=11 // pred_check_branch
          %358 = sbr.rel (%p356) target = $region36
        $region35: #{tpu_custom_call.1} parent=11 // pred_region
          _
        $region36: #{tpu_custom_call.1} parent=11 // pred_fallthru
          _
        // Predicated region
        $region37: #{tpu_custom_call.1} parent=11 // pred_check
          %p359 = pneg %p195
        $region38: #{tpu_custom_call.1} parent=11 // pred_check_branch
          %361 = sbr.rel (%p359) target = $region40
        $region39: #{tpu_custom_call.1} parent=11 // pred_region
          _
        $region40: #{tpu_custom_call.1} parent=11 // pred_fallthru
          _
        // Predicated region
        $region41: #{tpu_custom_call.1} parent=11 // pred_check
          %p362 = pneg %p216
        $region42: #{tpu_custom_call.1} parent=11 // pred_check_branch
          %364 = sbr.rel (%p362) target = $region44
        $region43: #{tpu_custom_call.1} parent=11 // pred_region
          _
        $region44: #{tpu_custom_call.1} parent=11 // pred_fallthru
          _
        // Predicated region
        $region45: #{tpu_custom_call.1} parent=11 // pred_check
          %p365 = pneg %p237
        $region46: #{tpu_custom_call.1} parent=11 // pred_check_branch
          %367 = sbr.rel (%p365) target = $region48
        $region47: #{tpu_custom_call.1} parent=11 // pred_region
          _
        $region48: #{tpu_custom_call.1} parent=11 // pred_fallthru
          _
        // Predicated region
        $region49: #{tpu_custom_call.1} parent=11 // pred_check
          %p368 = pneg %p258
        $region50: #{tpu_custom_call.1} parent=11 // pred_check_branch
          %370 = sbr.rel (%p368) target = $region52
        $region51: #{tpu_custom_call.1} parent=11 // pred_region
          _
        $region52: #{tpu_custom_call.1} parent=11 // pred_fallthru
          _
        // Predicated region
        $region53: #{tpu_custom_call.1} parent=11 // pred_check
          %p371 = pneg %p279
        $region54: #{tpu_custom_call.1} parent=11 // pred_check_branch
          %373 = sbr.rel (%p371) target = $region56
        $region55: #{tpu_custom_call.1} parent=11 // pred_region
          _
        $region56: #{tpu_custom_call.1} parent=11 // pred_fallthru
          _
        // Predicated region
        $region57: #{tpu_custom_call.1} parent=11 // pred_check
          %p374 = pneg %p300
        $region58: #{tpu_custom_call.1} parent=11 // pred_check_branch
          %376 = sbr.rel (%p374) target = $region60
        $region59: #{tpu_custom_call.1} parent=11 // pred_region
          _
        $region60: #{tpu_custom_call.1} parent=11 // pred_fallthru
          _
      $region12: #{tpu_custom_call.1} parent=5 // pred_fallthru
        _
      %p377 = scmp.lt.s32.totalorder %s22, 2
      // Predicated region
      $region61: #{tpu_custom_call.1} parent=5 // pred_check
        %p378 = pneg %p377
      $region62: #{tpu_custom_call.1} parent=5 // pred_check_branch
        %380 = sbr.rel (%p378) target = $region64
      $region63: #{tpu_custom_call.1} parent=5 // pred_region
        // Predicated region
        $region65: #{tpu_custom_call.1} parent=63 // pred_check
          %p381 = pneg %p42
        $region66: #{tpu_custom_call.1} parent=63 // pred_check_branch
          %383 = sbr.rel (%p381) target = $region68
        $region67: #{tpu_custom_call.1} parent=63 // pred_region
          %s384 = smul.u32 4, %s22
          %p385 = scmp.lt.s32.totalorder %s384, 7
          %s386 = scalar_select %p385, %s384, 7
          %s387 = smul.addr %s386, 7
          %s388 = smul.addr %s387, 4
          %s389 = scalar_lea.vmem %s0, %s388
          %s390 = smul.u32 4, %s22
        $region68: #{tpu_custom_call.1} parent=63 // pred_fallthru
          _
      $region64: #{tpu_custom_call.1} parent=5 // pred_fallthru
        _
      %p391 = scmp.le.s32.totalorder 1, %s22
      %p392 = scmp.lt.s32.totalorder %s22, 3
      %p393 = pnand %p391, %p392
      %p394 = pneg %p393
      // Predicated region
      $region69: #{tpu_custom_call.1} parent=5 // pred_check
        _
      $region70: #{tpu_custom_call.1} parent=5 // pred_check_branch
        %396 = sbr.rel (%p393) target = $region72
      $region71: #{tpu_custom_call.1} parent=5 // pred_region
        %s397 = ssub.s32 %s22, 1
        %s398 = smul.u32 4, %s27
        %p399 = scmp.lt.s32.totalorder %s398, 7
        %s400 = scalar_select %p399, %s398, 7
        %s401 = smul.addr %s400, 7
        %s402 = smul.addr %s401, 4
        %s403 = scalar_lea.vmem %s0, %s402
        %p404 = pneg %p48
        %p405 = pneg %p45
        %p406 = pneg %p69
        %p407 = pneg %p66
        %p408 = pneg %p90
        %p409 = pneg %p87
        %p410 = pneg %p111
        %p411 = pneg %p108
        %p412 = pneg %p132
        %p413 = pneg %p129
        %p414 = pneg %p153
        %p415 = pneg %p150
        %p416 = pneg %p174
        %p417 = pneg %p171
        %p418 = pneg %p195
        %p419 = pneg %p192
        %p420 = pneg %p216
        %p421 = pneg %p213
        %p422 = pneg %p237
        %p423 = pneg %p234
        %p424 = pneg %p258
        %p425 = pneg %p255
        %p426 = pneg %p279
        %p427 = pneg %p276
        %p428 = pneg %p300
        %p429 = pneg %p297
        %p430 = pneg %p326
        %p431 = pneg %p323
        %s432 = sand.u32 %s313, 1
        %s433 = scalar_lea.sflag [#allocation3], %s432
        %s434 = sand.u32 %s313, 1
        %s435 = smul.addr %s434, 32
        %s436 = scalar_lea.vmem [#allocation2], %s435
        %s437 = smul.u32 4, %s27
        %p438 = scmp.lt.s32.totalorder %s437, 7
        %s439 = scalar_select %p438, %s437, 7
        %s440 = smul.addr %s439, 7
        %s441 = smul.addr %s440, 4
        %s442 = scalar_lea.vmem %s0, %s441
        %s443 = smul.u32 4, %s27
        %s444 = smul.u32 4, %s27
        %v446 = vld [vmem:[%s442] sm:$0xff]
        %v447 = vld [vmem:[%s442 + $0x8] sm:$0xff]
        %v448 = vld [vmem:[%s442 + $0x10] sm:$0xff]
        %v449 = vld [vmem:[%s442 + $0x18] sm:$0xf]
        %v450 = vld [vmem:[%s442 + $0x1c] sm:$0xff]
        %v451 = vld [vmem:[%s442 + $0x24] sm:$0xff]
        %v452 = vld [vmem:[%s442 + $0x2c] sm:$0xff]
        %v453 = vld [vmem:[%s442 + $0x34] sm:$0xf]
        %v454 = vld [vmem:[%s442 + $0x38] sm:$0xff]
        %v455 = vld [vmem:[%s442 + $0x40] sm:$0xff]
        %v456 = vld [vmem:[%s442 + $0x48] sm:$0xff]
        %v457 = vld [vmem:[%s442 + $0x50] sm:$0xf]
        %v458 = vld [vmem:[%s442 + $0x54] sm:$0xff]
        %v459 = vld [vmem:[%s442 + $0x5c] sm:$0xff]
        %v460 = vld [vmem:[%s442 + $0x64] sm:$0xff]
        %v461 = vld [vmem:[%s442 + $0x6c] sm:$0xf]
        %v462 = vld [vmem:[%s1] sm:$0xff]
        %v463 = vld [vmem:[%s1 + $0x8] sm:$0xff]
        %v464 = vld [vmem:[%s1 + $0x10] sm:$0xff]
        %v465 = vld [vmem:[%s1 + $0x18] sm:$0xff]
        %v466 = vld [vmem:[%s1 + $0x20] sm:$0xff]
        %v467 = vld [vmem:[%s1 + $0x28] sm:$0xff]
        %v468 = vld [vmem:[%s1 + $0x30] sm:$0xff]
        %v469 = vld [vmem:[%s1 + $0x38] sm:$0xff]
        %v470 = vld [vmem:[%s1 + $0x40] sm:$0xff]
        %v471 = vld [vmem:[%s1 + $0x48] sm:$0xff]
        %v472 = vld [vmem:[%s1 + $0x50] sm:$0xff]
        %v473 = vld [vmem:[%s1 + $0x58] sm:$0xff]
        %v474 = vld [vmem:[%s1 + $0x60] sm:$0xff]
        %v475 = vld [vmem:[%s1 + $0x68] sm:$0xff]
        %v476 = vld [vmem:[%s1 + $0x70] sm:$0xff]
        %v477 = vld [vmem:[%s1 + $0x78] sm:$0xff]
        %v478 = vld [vmem:[%s1 + $0x80] sm:$0xff]
        %v479 = vld [vmem:[%s1 + $0x88] sm:$0xff]
        %v480 = vld [vmem:[%s1 + $0x90] sm:$0xff]
        %v481 = vld [vmem:[%s1 + $0x98] sm:$0xff]
        %v482 = vld [vmem:[%s1 + $0xa0] sm:$0xff]
        %v483 = vld [vmem:[%s1 + $0xa8] sm:$0xff]
        %v484 = vld [vmem:[%s1 + $0xb0] sm:$0xff]
        %v485 = vld [vmem:[%s1 + $0xb8] sm:$0xff]
        %v486 = vld [vmem:[%s1 + $0xc0] sm:$0xff]
        %v487 = vld [vmem:[%s1 + $0xc8] sm:$0xff]
        %v488 = vld [vmem:[%s1 + $0xd0] sm:$0xff]
        %v489 = vld [vmem:[%s1 + $0xd8] sm:$0xff]
        %v490 = vld [vmem:[%s1 + $0xe0] sm:$0xff]
        %v491 = vld [vmem:[%s1 + $0xe8] sm:$0xff]
        %v492 = vld [vmem:[%s1 + $0xf0] sm:$0xff]
        %v493 = vld [vmem:[%s1 + $0xf8] sm:$0xff]
        %v494 = vld [vmem:[%s1 + $0x100] sm:$0xff]
        %v495 = vld [vmem:[%s1 + $0x108] sm:$0xff]
        %v496 = vld [vmem:[%s1 + $0x110] sm:$0xff]
        %v497 = vld [vmem:[%s1 + $0x118] sm:$0xff]
        %v498 = vld [vmem:[%s1 + $0x120] sm:$0xff]
        %v499 = vld [vmem:[%s1 + $0x128] sm:$0xff]
        %v500 = vld [vmem:[%s1 + $0x130] sm:$0xff]
        %v501 = vld [vmem:[%s1 + $0x138] sm:$0xff]
        %v502 = vld [vmem:[%s1 + $0x140] sm:$0xff]
        %v503 = vld [vmem:[%s1 + $0x148] sm:$0xff]
        %v504 = vld [vmem:[%s1 + $0x150] sm:$0xff]
        %v505 = vld [vmem:[%s1 + $0x158] sm:$0xff]
        %v506 = vld [vmem:[%s1 + $0x160] sm:$0xff]
        %v507 = vld [vmem:[%s1 + $0x168] sm:$0xff]
        %v508 = vld [vmem:[%s1 + $0x170] sm:$0xff]
        %v509 = vld [vmem:[%s1 + $0x178] sm:$0xff]
        %v510 = vld [vmem:[%s1 + $0x180] sm:$0xff]
        %v511 = vld [vmem:[%s1 + $0x188] sm:$0xff]
        %v512 = vld [vmem:[%s1 + $0x190] sm:$0xff]
        %v513 = vld [vmem:[%s1 + $0x198] sm:$0xff]
        %v514 = vld [vmem:[%s1 + $0x1a0] sm:$0xff]
        %v515 = vld [vmem:[%s1 + $0x1a8] sm:$0xff]
        %v516 = vld [vmem:[%s1 + $0x1b0] sm:$0xff]
        %v517 = vld [vmem:[%s1 + $0x1b8] sm:$0xff]
        %v518 = vld [vmem:[%s1 + $0x1c0] sm:$0xff]
        %v519 = vld [vmem:[%s1 + $0x1c8] sm:$0xff]
        %v520 = vld [vmem:[%s1 + $0x1d0] sm:$0xff]
        %v521 = vld [vmem:[%s1 + $0x1d8] sm:$0xff]
        %v522 = vld [vmem:[%s1 + $0x1e0] sm:$0xff]
        %v523 = vld [vmem:[%s1 + $0x1e8] sm:$0xff]
        %v524 = vld [vmem:[%s1 + $0x1f0] sm:$0xff]
        %v525 = vld [vmem:[%s1 + $0x1f8] sm:$0xff]
        %v526 = vld [vmem:[%s1 + $0x200] sm:$0xff]
        %v527 = vld [vmem:[%s1 + $0x208] sm:$0xff]
        %v528 = vld [vmem:[%s1 + $0x210] sm:$0xff]
        %v529 = vld [vmem:[%s1 + $0x218] sm:$0xff]
        %v530 = vld [vmem:[%s1 + $0x220] sm:$0xff]
        %v531 = vld [vmem:[%s1 + $0x228] sm:$0xff]
        %v532 = vld [vmem:[%s1 + $0x230] sm:$0xff]
        %v533 = vld [vmem:[%s1 + $0x238] sm:$0xff]
        %v534 = vld [vmem:[%s1 + $0x240] sm:$0xff]
        %v535 = vld [vmem:[%s1 + $0x248] sm:$0xff]
        %v536 = vld [vmem:[%s1 + $0x250] sm:$0xff]
        %v537 = vld [vmem:[%s1 + $0x258] sm:$0xff]
        %v538 = vld [vmem:[%s1 + $0x260] sm:$0xff]
        %v539 = vld [vmem:[%s1 + $0x268] sm:$0xff]
        %v540 = vld [vmem:[%s1 + $0x270] sm:$0xff]
        %v541 = vld [vmem:[%s1 + $0x278] sm:$0xff]
        %v542 = vld [vmem:[%s1 + $0x280] sm:$0xff]
        %v543 = vld [vmem:[%s1 + $0x288] sm:$0xff]
        %v544 = vld [vmem:[%s1 + $0x290] sm:$0xff]
        %v545 = vld [vmem:[%s1 + $0x298] sm:$0xff]
        %v546 = vld [vmem:[%s1 + $0x2a0] sm:$0xff]
        %v547 = vld [vmem:[%s1 + $0x2a8] sm:$0xff]
        %v548 = vld [vmem:[%s1 + $0x2b0] sm:$0xff]
        %v549 = vld [vmem:[%s1 + $0x2b8] sm:$0xff]
        %v550 = vld [vmem:[%s1 + $0x2c0] sm:$0xff]
        %v551 = vld [vmem:[%s1 + $0x2c8] sm:$0xff]
        %v552 = vld [vmem:[%s1 + $0x2d0] sm:$0xff]
        %v553 = vld [vmem:[%s1 + $0x2d8] sm:$0xff]
        %v554 = vld [vmem:[%s1 + $0x2e0] sm:$0xff]
        %v555 = vld [vmem:[%s1 + $0x2e8] sm:$0xff]
        %v556 = vld [vmem:[%s1 + $0x2f0] sm:$0xff]
        %v557 = vld [vmem:[%s1 + $0x2f8] sm:$0xff]
        %v558 = vld [vmem:[%s1 + $0x300] sm:$0xff]
        %v559 = vld [vmem:[%s1 + $0x308] sm:$0xff]
        %v560 = vld [vmem:[%s2] sm:$0x3]
        %v562 = vlaneseq
        %v563 = vshrl.u32 %v562, 7
        %v564 = vsub.s32 0, %v563
        %v565 = vrot.slane %v560, %v564
        %v566 = vlaneseq
        %v567 = vshrl.u32 %v566, 7
        %v568 = vsub.s32 1, %v567
        %v569 = vrot.slane %v560, %v568
        %v588 = vunpack.c.l.b16 %v446
        %v589 = vunpack.c.h.b16 %v446
        %v590 = vunpack.c.l.b16 %v447
        %v591 = vunpack.c.h.b16 %v447
        %v592 = vunpack.c.l.b16 %v448
        %v593 = vunpack.c.h.b16 %v448
        %v594 = vunpack.c.l.b16 %v449
        %v595 = vunpack.c.l.b16 %v450
        %v596 = vunpack.c.h.b16 %v450
        %v597 = vunpack.c.l.b16 %v451
        %v598 = vunpack.c.h.b16 %v451
        %v599 = vunpack.c.l.b16 %v452
        %v600 = vunpack.c.h.b16 %v452
        %v601 = vunpack.c.l.b16 %v453
        %v602 = vunpack.c.l.b16 %v454
        %v603 = vunpack.c.h.b16 %v454
        %v604 = vunpack.c.l.b16 %v455
        %v605 = vunpack.c.h.b16 %v455
        %v606 = vunpack.c.l.b16 %v456
        %v607 = vunpack.c.h.b16 %v456
        %v608 = vunpack.c.l.b16 %v457
        %v609 = vunpack.c.l.b16 %v458
        %v610 = vunpack.c.h.b16 %v458
        %v611 = vunpack.c.l.b16 %v459
        %v612 = vunpack.c.h.b16 %v459
        %v613 = vunpack.c.l.b16 %v460
        %v614 = vunpack.c.h.b16 %v460
        %v615 = vunpack.c.l.b16 %v461
        %v616 = vpack.c.b16 %v595, %v588
        %v617 = vpack.c.b16 %v596, %v589
        %v618 = vpack.c.b16 %v597, %v590
        %v619 = vpack.c.b16 %v598, %v591
        %v620 = vpack.c.b16 %v599, %v592
        %v621 = vpack.c.b16 %v600, %v593
        %v622 = vpack.c.b16 %v601, %v594
        %v623 = vpack.c.b16 %v609, %v602
        %v624 = vpack.c.b16 %v610, %v603
        %v625 = vpack.c.b16 %v611, %v604
        %v626 = vpack.c.b16 %v612, %v605
        %v627 = vpack.c.b16 %v613, %v606
        %v628 = vpack.c.b16 %v614, %v607
        %v629 = vpack.c.b16 %v615, %v608
        %v740 = vunpack.c.l.b16 %v462
        %v741 = vunpack.c.h.b16 %v462
        %v742 = vunpack.c.l.b16 %v463
        %v743 = vunpack.c.h.b16 %v463
        %v744 = vunpack.c.l.b16 %v464
        %v745 = vunpack.c.h.b16 %v464
        %v746 = vunpack.c.l.b16 %v465
        %v747 = vunpack.c.h.b16 %v465
        %v748 = vunpack.c.l.b16 %v466
        %v749 = vunpack.c.h.b16 %v466
        %v750 = vunpack.c.l.b16 %v467
        %v751 = vunpack.c.h.b16 %v467
        %v752 = vunpack.c.l.b16 %v468
        %v753 = vunpack.c.h.b16 %v468
        %v754 = vunpack.c.l.b16 %v469
        %v755 = vunpack.c.h.b16 %v469
        %v756 = vunpack.c.l.b16 %v470
        %v757 = vunpack.c.h.b16 %v470
        %v758 = vunpack.c.l.b16 %v471
        %v759 = vunpack.c.h.b16 %v471
        %v760 = vunpack.c.l.b16 %v472
        %v761 = vunpack.c.h.b16 %v472
        %v762 = vunpack.c.l.b16 %v473
        %v763 = vunpack.c.h.b16 %v473
        %v764 = vunpack.c.l.b16 %v474
        %v765 = vunpack.c.h.b16 %v474
        %v766 = vunpack.c.l.b16 %v475
        %v767 = vunpack.c.h.b16 %v475
        %v768 = vunpack.c.l.b16 %v476
        %v769 = vunpack.c.h.b16 %v476
        %v770 = vunpack.c.l.b16 %v477
        %v771 = vunpack.c.h.b16 %v477
        %v772 = vunpack.c.l.b16 %v478
        %v773 = vunpack.c.h.b16 %v478
        %v774 = vunpack.c.l.b16 %v479
        %v775 = vunpack.c.h.b16 %v479
        %v776 = vunpack.c.l.b16 %v480
        %v777 = vunpack.c.h.b16 %v480
        %v778 = vunpack.c.l.b16 %v481
        %v779 = vunpack.c.h.b16 %v481
        %v780 = vunpack.c.l.b16 %v482
        %v781 = vunpack.c.h.b16 %v482
        %v782 = vunpack.c.l.b16 %v483
        %v783 = vunpack.c.h.b16 %v483
        %v784 = vunpack.c.l.b16 %v484
        %v785 = vunpack.c.h.b16 %v484
        %v786 = vunpack.c.l.b16 %v485
        %v787 = vunpack.c.h.b16 %v485
        %v788 = vunpack.c.l.b16 %v486
        %v789 = vunpack.c.h.b16 %v486
        %v790 = vunpack.c.l.b16 %v487
        %v791 = vunpack.c.h.b16 %v487
        %v792 = vunpack.c.l.b16 %v488
        %v793 = vunpack.c.h.b16 %v488
        %v794 = vunpack.c.l.b16 %v489
        %v795 = vunpack.c.h.b16 %v489
        %v796 = vunpack.c.l.b16 %v490
        %v797 = vunpack.c.h.b16 %v490
        %v798 = vunpack.c.l.b16 %v491
        %v799 = vunpack.c.h.b16 %v491
        %v800 = vunpack.c.l.b16 %v492
        %v801 = vunpack.c.h.b16 %v492
        %v802 = vunpack.c.l.b16 %v493
        %v803 = vunpack.c.h.b16 %v493
        %v804 = vunpack.c.l.b16 %v494
        %v805 = vunpack.c.h.b16 %v494
        %v806 = vunpack.c.l.b16 %v495
        %v807 = vunpack.c.h.b16 %v495
        %v808 = vunpack.c.l.b16 %v496
        %v809 = vunpack.c.h.b16 %v496
        %v810 = vunpack.c.l.b16 %v497
        %v811 = vunpack.c.h.b16 %v497
        %v812 = vunpack.c.l.b16 %v498
        %v813 = vunpack.c.h.b16 %v498
        %v814 = vunpack.c.l.b16 %v499
        %v815 = vunpack.c.h.b16 %v499
        %v816 = vunpack.c.l.b16 %v500
        %v817 = vunpack.c.h.b16 %v500
        %v818 = vunpack.c.l.b16 %v501
        %v819 = vunpack.c.h.b16 %v501
        %v820 = vunpack.c.l.b16 %v502
        %v821 = vunpack.c.h.b16 %v502
        %v822 = vunpack.c.l.b16 %v503
        %v823 = vunpack.c.h.b16 %v503
        %v824 = vunpack.c.l.b16 %v504
        %v825 = vunpack.c.h.b16 %v504
        %v826 = vunpack.c.l.b16 %v505
        %v827 = vunpack.c.h.b16 %v505
        %v828 = vunpack.c.l.b16 %v506
        %v829 = vunpack.c.h.b16 %v506
        %v830 = vunpack.c.l.b16 %v507
        %v831 = vunpack.c.h.b16 %v507
        %v832 = vunpack.c.l.b16 %v508
        %v833 = vunpack.c.h.b16 %v508
        %v834 = vunpack.c.l.b16 %v509
        %v835 = vunpack.c.h.b16 %v509
        %v836 = vunpack.c.l.b16 %v510
        %v837 = vunpack.c.h.b16 %v510
        %v838 = vunpack.c.l.b16 %v511
        %v839 = vunpack.c.h.b16 %v511
        %v840 = vunpack.c.l.b16 %v512
        %v841 = vunpack.c.h.b16 %v512
        %v842 = vunpack.c.l.b16 %v513
        %v843 = vunpack.c.h.b16 %v513
        %v844 = vunpack.c.l.b16 %v514
        %v845 = vunpack.c.h.b16 %v514
        %v846 = vunpack.c.l.b16 %v515
        %v847 = vunpack.c.h.b16 %v515
        %v848 = vunpack.c.l.b16 %v516
        %v849 = vunpack.c.h.b16 %v516
        %v850 = vunpack.c.l.b16 %v517
        %v851 = vunpack.c.h.b16 %v517
        %v852 = vunpack.c.l.b16 %v518
        %v853 = vunpack.c.h.b16 %v518
        %v854 = vunpack.c.l.b16 %v519
        %v855 = vunpack.c.h.b16 %v519
        %v856 = vunpack.c.l.b16 %v520
        %v857 = vunpack.c.h.b16 %v520
        %v858 = vunpack.c.l.b16 %v521
        %v859 = vunpack.c.h.b16 %v521
        %v860 = vunpack.c.l.b16 %v522
        %v861 = vunpack.c.h.b16 %v522
        %v862 = vunpack.c.l.b16 %v523
        %v863 = vunpack.c.h.b16 %v523
        %v864 = vunpack.c.l.b16 %v524
        %v865 = vunpack.c.h.b16 %v524
        %v866 = vunpack.c.l.b16 %v525
        %v867 = vunpack.c.h.b16 %v525
        %v868 = vunpack.c.l.b16 %v526
        %v869 = vunpack.c.h.b16 %v526
        %v870 = vunpack.c.l.b16 %v527
        %v871 = vunpack.c.h.b16 %v527
        %v872 = vunpack.c.l.b16 %v528
        %v873 = vunpack.c.h.b16 %v528
        %v874 = vunpack.c.l.b16 %v529
        %v875 = vunpack.c.h.b16 %v529
        %v876 = vunpack.c.l.b16 %v530
        %v877 = vunpack.c.h.b16 %v530
        %v878 = vunpack.c.l.b16 %v531
        %v879 = vunpack.c.h.b16 %v531
        %v880 = vunpack.c.l.b16 %v532
        %v881 = vunpack.c.h.b16 %v532
        %v882 = vunpack.c.l.b16 %v533
        %v883 = vunpack.c.h.b16 %v533
        %v884 = vunpack.c.l.b16 %v534
        %v885 = vunpack.c.h.b16 %v534
        %v886 = vunpack.c.l.b16 %v535
        %v887 = vunpack.c.h.b16 %v535
        %v888 = vunpack.c.l.b16 %v536
        %v889 = vunpack.c.h.b16 %v536
        %v890 = vunpack.c.l.b16 %v537
        %v891 = vunpack.c.h.b16 %v537
        %v892 = vunpack.c.l.b16 %v538
        %v893 = vunpack.c.h.b16 %v538
        %v894 = vunpack.c.l.b16 %v539
        %v895 = vunpack.c.h.b16 %v539
        %v896 = vunpack.c.l.b16 %v540
        %v897 = vunpack.c.h.b16 %v540
        %v898 = vunpack.c.l.b16 %v541
        %v899 = vunpack.c.h.b16 %v541
        %v900 = vunpack.c.l.b16 %v542
        %v901 = vunpack.c.h.b16 %v542
        %v902 = vunpack.c.l.b16 %v543
        %v903 = vunpack.c.h.b16 %v543
        %v904 = vunpack.c.l.b16 %v544
        %v905 = vunpack.c.h.b16 %v544
        %v906 = vunpack.c.l.b16 %v545
        %v907 = vunpack.c.h.b16 %v545
        %v908 = vunpack.c.l.b16 %v546
        %v909 = vunpack.c.h.b16 %v546
        %v910 = vunpack.c.l.b16 %v547
        %v911 = vunpack.c.h.b16 %v547
        %v912 = vunpack.c.l.b16 %v548
        %v913 = vunpack.c.h.b16 %v548
        %v914 = vunpack.c.l.b16 %v549
        %v915 = vunpack.c.h.b16 %v549
        %v916 = vunpack.c.l.b16 %v550
        %v917 = vunpack.c.h.b16 %v550
        %v918 = vunpack.c.l.b16 %v551
        %v919 = vunpack.c.h.b16 %v551
        %v920 = vunpack.c.l.b16 %v552
        %v921 = vunpack.c.h.b16 %v552
        %v922 = vunpack.c.l.b16 %v553
        %v923 = vunpack.c.h.b16 %v553
        %v924 = vunpack.c.l.b16 %v554
        %v925 = vunpack.c.h.b16 %v554
        %v926 = vunpack.c.l.b16 %v555
        %v927 = vunpack.c.h.b16 %v555
        %v928 = vunpack.c.l.b16 %v556
        %v929 = vunpack.c.h.b16 %v556
        %v930 = vunpack.c.l.b16 %v557
        %v931 = vunpack.c.h.b16 %v557
        %v932 = vunpack.c.l.b16 %v558
        %v933 = vunpack.c.h.b16 %v558
        %v934 = vunpack.c.l.b16 %v559
        %v935 = vunpack.c.h.b16 %v559
        %v936 = vpack.c.b16 %v742, %v740
        %v937 = vpack.c.b16 %v743, %v741
        %v938 = vpack.c.b16 %v746, %v744
        %v939 = vpack.c.b16 %v747, %v745
        %v940 = vpack.c.b16 %v750, %v748
        %v941 = vpack.c.b16 %v751, %v749
        %v942 = vpack.c.b16 %v754, %v752
        %v943 = vpack.c.b16 %v755, %v753
        %v944 = vpack.c.b16 %v758, %v756
        %v945 = vpack.c.b16 %v759, %v757
        %v946 = vpack.c.b16 %v762, %v760
        %v947 = vpack.c.b16 %v763, %v761
        %v948 = vpack.c.b16 %v766, %v764
        %v949 = vpack.c.b16 %v767, %v765
        %v950 = vpack.c.b16 %v770, %v768
        %v951 = vpack.c.b16 %v771, %v769
        %v952 = vpack.c.b16 %v774, %v772
        %v953 = vpack.c.b16 %v775, %v773
        %v954 = vpack.c.b16 %v778, %v776
        %v955 = vpack.c.b16 %v779, %v777
        %v956 = vpack.c.b16 %v782, %v780
        %v957 = vpack.c.b16 %v783, %v781
        %v958 = vpack.c.b16 %v786, %v784
        %v959 = vpack.c.b16 %v787, %v785
        %v960 = vpack.c.b16 %v790, %v788
        %v961 = vpack.c.b16 %v791, %v789
        %v962 = vpack.c.b16 %v794, %v792
        %v963 = vpack.c.b16 %v795, %v793
        %v964 = vpack.c.b16 %v798, %v796
        %v965 = vpack.c.b16 %v799, %v797
        %v966 = vpack.c.b16 %v802, %v800
        %v967 = vpack.c.b16 %v803, %v801
        %v968 = vpack.c.b16 %v806, %v804
        %v969 = vpack.c.b16 %v807, %v805
        %v970 = vpack.c.b16 %v810, %v808
        %v971 = vpack.c.b16 %v811, %v809
        %v972 = vpack.c.b16 %v814, %v812
        %v973 = vpack.c.b16 %v815, %v813
        %v974 = vpack.c.b16 %v818, %v816
        %v975 = vpack.c.b16 %v819, %v817
        %v976 = vpack.c.b16 %v822, %v820
        %v977 = vpack.c.b16 %v823, %v821
        %v978 = vpack.c.b16 %v826, %v824
        %v979 = vpack.c.b16 %v827, %v825
        %v980 = vpack.c.b16 %v830, %v828
        %v981 = vpack.c.b16 %v831, %v829
        %v982 = vpack.c.b16 %v834, %v832
        %v983 = vpack.c.b16 %v835, %v833
        %v984 = vpack.c.b16 %v838, %v836
        %v985 = vpack.c.b16 %v839, %v837
        %v986 = vpack.c.b16 %v842, %v840
        %v987 = vpack.c.b16 %v843, %v841
        %v988 = vpack.c.b16 %v846, %v844
        %v989 = vpack.c.b16 %v847, %v845
        %v990 = vpack.c.b16 %v850, %v848
        %v991 = vpack.c.b16 %v851, %v849
        %v992 = vpack.c.b16 %v854, %v852
        %v993 = vpack.c.b16 %v855, %v853
        %v994 = vpack.c.b16 %v858, %v856
        %v995 = vpack.c.b16 %v859, %v857
        %v996 = vpack.c.b16 %v862, %v860
        %v997 = vpack.c.b16 %v863, %v861
        %v998 = vpack.c.b16 %v866, %v864
        %v999 = vpack.c.b16 %v867, %v865
        %v1000 = vpack.c.b16 %v870, %v868
        %v1001 = vpack.c.b16 %v871, %v869
        %v1002 = vpack.c.b16 %v874, %v872
        %v1003 = vpack.c.b16 %v875, %v873
        %v1004 = vpack.c.b16 %v878, %v876
        %v1005 = vpack.c.b16 %v879, %v877
        %v1006 = vpack.c.b16 %v882, %v880
        %v1007 = vpack.c.b16 %v883, %v881
        %v1008 = vpack.c.b16 %v886, %v884
        %v1009 = vpack.c.b16 %v887, %v885
        %v1010 = vpack.c.b16 %v890, %v888
        %v1011 = vpack.c.b16 %v891, %v889
        %v1012 = vpack.c.b16 %v894, %v892
        %v1013 = vpack.c.b16 %v895, %v893
        %v1014 = vpack.c.b16 %v898, %v896
        %v1015 = vpack.c.b16 %v899, %v897
        %v1016 = vpack.c.b16 %v902, %v900
        %v1017 = vpack.c.b16 %v903, %v901
        %v1018 = vpack.c.b16 %v906, %v904
        %v1019 = vpack.c.b16 %v907, %v905
        %v1020 = vpack.c.b16 %v910, %v908
        %v1021 = vpack.c.b16 %v911, %v909
        %v1022 = vpack.c.b16 %v914, %v912
        %v1023 = vpack.c.b16 %v915, %v913
        %v1024 = vpack.c.b16 %v918, %v916
        %v1025 = vpack.c.b16 %v919, %v917
        %v1026 = vpack.c.b16 %v922, %v920
        %v1027 = vpack.c.b16 %v923, %v921
        %v1028 = vpack.c.b16 %v926, %v924
        %v1029 = vpack.c.b16 %v927, %v925
        %v1030 = vpack.c.b16 %v930, %v928
        %v1031 = vpack.c.b16 %v931, %v929
        %v1032 = vpack.c.b16 %v934, %v932
        %v1033 = vpack.c.b16 %v935, %v933
        %vm1132 = vcmask 130048
        %v1134 = vsel %vm1132, %v622, 0
        %v1137 = vsel %vm1132, %v629, 0
        %1139 = vmatprep.subr.bf16.mxu0 %v951
        %1140 = vmatpush1.bf16.msra.mxu0 %v950
        %1141 = vmatprep.subr.bf16.mxu0 %v949
        %1142 = vmatpush1.bf16.msra.mxu0 %v948
        %1143 = vmatprep.subr.bf16.mxu0 %v947
        %1144 = vmatpush1.bf16.msra.mxu0 %v946
        %1145 = vmatprep.subr.bf16.mxu0 %v945
        %1146 = vmatpush1.bf16.msra.mxu0 %v944
        %1147 = vmatprep.subr.bf16.mxu0 %v943
        %1148 = vmatpush1.bf16.msra.mxu0 %v942
        %1149 = vmatprep.subr.bf16.mxu0 %v941
        %1150 = vmatpush1.bf16.msra.mxu0 %v940
        %1151 = vmatprep.subr.bf16.mxu0 %v939
        %1152 = vmatpush1.bf16.msra.mxu0 %v938
        %1153 = vmatprep.subr.bf16.mxu0 %v937
        %1154 = vmatpush1.bf16.msra.mxu0 %v936
        %1155 = vmatprep.subr.bf16.mxu0 %v967
        %1156 = vmatpush2.bf16.msra.mxu0 %v966
        %1157 = vmatprep.subr.bf16.mxu0 %v965
        %1158 = vmatpush2.bf16.msra.mxu0 %v964
        %1159 = vmatprep.subr.bf16.mxu0 %v963
        %1160 = vmatpush2.bf16.msra.mxu0 %v962
        %1161 = vmatprep.subr.bf16.mxu0 %v961
        %1162 = vmatpush2.bf16.msra.mxu0 %v960
        %1163 = vmatprep.subr.bf16.mxu0 %v959
        %1164 = vmatpush2.bf16.msra.mxu0 %v958
        %1165 = vmatprep.subr.bf16.mxu0 %v957
        %1166 = vmatpush2.bf16.msra.mxu0 %v956
        %1167 = vmatprep.subr.bf16.mxu0 %v955
        %1168 = vmatpush2.bf16.msra.mxu0 %v954
        %1169 = vmatprep.subr.bf16.mxu0 %v953
        %1170 = vmatpush2.bf16.msra.mxu0 %v952
        %1171 = vmatprep.mubr.bf16.mxu0 %v617
        %1172 = vmatmul.mubr.bf16.gmra.mxu0 %v616
        %v1173 = vpop.f32.mrf.mxu0
        %v1174 = vadd.f32 %v565, %v1173
        %v1175 = vpop.f32.mrf.mxu0
        %v1176 = vadd.f32 %v569, %v1175
        %v1177 = vpop.f32.mrf.mxu0
        %v1178 = vadd.f32 %v565, %v1177
        %v1179 = vpop.f32.mrf.mxu0
        %v1180 = vadd.f32 %v569, %v1179
        %1181 = vmatprep.mubr.bf16.mxu0 %v624
        %1182 = vmatmul.mubr.bf16.gmra.mxu0 %v623
        %v1183 = vpop.f32.mrf.mxu0
        %v1184 = vadd.f32 %v565, %v1183
        %v1185 = vpop.f32.mrf.mxu0
        %v1186 = vadd.f32 %v569, %v1185
        %v1187 = vpop.f32.mrf.mxu0
        %v1188 = vadd.f32 %v565, %v1187
        %v1189 = vpop.f32.mrf.mxu0
        %v1190 = vadd.f32 %v569, %v1189
        %1191 = vdwg.mxu0
        %1192 = vmatprep.subr.bf16.mxu0 %v983
        %1193 = vmatpush1.bf16.msra.mxu0 %v982
        %1194 = vmatprep.subr.bf16.mxu0 %v981
        %1195 = vmatpush1.bf16.msra.mxu0 %v980
        %1196 = vmatprep.subr.bf16.mxu0 %v979
        %1197 = vmatpush1.bf16.msra.mxu0 %v978
        %1198 = vmatprep.subr.bf16.mxu0 %v977
        %1199 = vmatpush1.bf16.msra.mxu0 %v976
        %1200 = vmatprep.subr.bf16.mxu0 %v975
        %1201 = vmatpush1.bf16.msra.mxu0 %v974
        %1202 = vmatprep.subr.bf16.mxu0 %v973
        %1203 = vmatpush1.bf16.msra.mxu0 %v972
        %1204 = vmatprep.subr.bf16.mxu0 %v971
        %1205 = vmatpush1.bf16.msra.mxu0 %v970
        %1206 = vmatprep.subr.bf16.mxu0 %v969
        %1207 = vmatpush1.bf16.msra.mxu0 %v968
        %1208 = vmatprep.subr.bf16.mxu0 %v999
        %1209 = vmatpush2.bf16.msra.mxu0 %v998
        %1210 = vmatprep.subr.bf16.mxu0 %v997
        %1211 = vmatpush2.bf16.msra.mxu0 %v996
        %1212 = vmatprep.subr.bf16.mxu0 %v995
        %1213 = vmatpush2.bf16.msra.mxu0 %v994
        %1214 = vmatprep.subr.bf16.mxu0 %v993
        %1215 = vmatpush2.bf16.msra.mxu0 %v992
        %1216 = vmatprep.subr.bf16.mxu0 %v991
        %1217 = vmatpush2.bf16.msra.mxu0 %v990
        %1218 = vmatprep.subr.bf16.mxu0 %v989
        %1219 = vmatpush2.bf16.msra.mxu0 %v988
        %1220 = vmatprep.subr.bf16.mxu0 %v987
        %1221 = vmatpush2.bf16.msra.mxu0 %v986
        %1222 = vmatprep.subr.bf16.mxu0 %v985
        %1223 = vmatpush2.bf16.msra.mxu0 %v984
        %1224 = vmatprep.mubr.bf16.mxu0 %v619
        %1225 = vmatmul.mubr.bf16.gmra.mxu0 %v618
        %v1226 = vpop.f32.mrf.mxu0
        %v1227 = vadd.f32 %v1174, %v1226
        %v1228 = vpop.f32.mrf.mxu0
        %v1229 = vadd.f32 %v1176, %v1228
        %v1230 = vpop.f32.mrf.mxu0
        %v1231 = vadd.f32 %v1178, %v1230
        %v1232 = vpop.f32.mrf.mxu0
        %v1233 = vadd.f32 %v1180, %v1232
        %1234 = vmatprep.mubr.bf16.mxu0 %v626
        %1235 = vmatmul.mubr.bf16.gmra.mxu0 %v625
        %v1236 = vpop.f32.mrf.mxu0
        %v1237 = vadd.f32 %v1184, %v1236
        %v1238 = vpop.f32.mrf.mxu0
        %v1239 = vadd.f32 %v1186, %v1238
        %v1240 = vpop.f32.mrf.mxu0
        %v1241 = vadd.f32 %v1188, %v1240
        %v1242 = vpop.f32.mrf.mxu0
        %v1243 = vadd.f32 %v1190, %v1242
        %1244 = vdwg.mxu0
        %1245 = vmatprep.subr.bf16.mxu0 %v1015
        %1246 = vmatpush1.bf16.msra.mxu0 %v1014
        %1247 = vmatprep.subr.bf16.mxu0 %v1013
        %1248 = vmatpush1.bf16.msra.mxu0 %v1012
        %1249 = vmatprep.subr.bf16.mxu0 %v1011
        %1250 = vmatpush1.bf16.msra.mxu0 %v1010
        %1251 = vmatprep.subr.bf16.mxu0 %v1009
        %1252 = vmatpush1.bf16.msra.mxu0 %v1008
        %1253 = vmatprep.subr.bf16.mxu0 %v1007
        %1254 = vmatpush1.bf16.msra.mxu0 %v1006
        %1255 = vmatprep.subr.bf16.mxu0 %v1005
        %1256 = vmatpush1.bf16.msra.mxu0 %v1004
        %1257 = vmatprep.subr.bf16.mxu0 %v1003
        %1258 = vmatpush1.bf16.msra.mxu0 %v1002
        %1259 = vmatprep.subr.bf16.mxu0 %v1001
        %1260 = vmatpush1.bf16.msra.mxu0 %v1000
        %1261 = vmatprep.subr.bf16.mxu0 %v1031
        %1262 = vmatpush2.bf16.msra.mxu0 %v1030
        %1263 = vmatprep.subr.bf16.mxu0 %v1029
        %1264 = vmatpush2.bf16.msra.mxu0 %v1028
        %1265 = vmatprep.subr.bf16.mxu0 %v1027
        %1266 = vmatpush2.bf16.msra.mxu0 %v1026
        %1267 = vmatprep.subr.bf16.mxu0 %v1025
        %1268 = vmatpush2.bf16.msra.mxu0 %v1024
        %1269 = vmatprep.subr.bf16.mxu0 %v1023
        %1270 = vmatpush2.bf16.msra.mxu0 %v1022
        %1271 = vmatprep.subr.bf16.mxu0 %v1021
        %1272 = vmatpush2.bf16.msra.mxu0 %v1020
        %1273 = vmatprep.subr.bf16.mxu0 %v1019
        %1274 = vmatpush2.bf16.msra.mxu0 %v1018
        %1275 = vmatprep.subr.bf16.mxu0 %v1017
        %1276 = vmatpush2.bf16.msra.mxu0 %v1016
        %1277 = vmatprep.mubr.bf16.mxu0 %v621
        %1278 = vmatmul.mubr.bf16.gmra.mxu0 %v620
        %v1279 = vpop.f32.mrf.mxu0
        %v1280 = vadd.f32 %v1227, %v1279
        %v1281 = vpop.f32.mrf.mxu0
        %v1282 = vadd.f32 %v1229, %v1281
        %v1283 = vpop.f32.mrf.mxu0
        %v1284 = vadd.f32 %v1231, %v1283
        %v1285 = vpop.f32.mrf.mxu0
        %v1286 = vadd.f32 %v1233, %v1285
        %1287 = vmatprep.mubr.bf16.mxu0 %v628
        %1288 = vmatmul.mubr.bf16.gmra.mxu0 %v627
        %v1289 = vpop.f32.mrf.mxu0
        %v1290 = vadd.f32 %v1237, %v1289
        %v1291 = vpop.f32.mrf.mxu0
        %v1292 = vadd.f32 %v1239, %v1291
        %v1293 = vpop.f32.mrf.mxu0
        %v1294 = vadd.f32 %v1241, %v1293
        %v1295 = vpop.f32.mrf.mxu0
        %v1296 = vadd.f32 %v1243, %v1295
        %1297 = vdwg.mxu0
        %1298 = vmatprep.subr.bf16.mxu0 0
        %1299 = vmatpush1.bf16.msra.mxu0 0
        %1300 = vmatprep.subr.bf16.mxu0 0
        %1301 = vmatpush1.bf16.msra.mxu0 0
        %1302 = vmatprep.subr.bf16.mxu0 0
        %1303 = vmatpush1.bf16.msra.mxu0 0
        %1304 = vmatprep.subr.bf16.mxu0 0
        %1305 = vmatpush1.bf16.msra.mxu0 0
        %1306 = vmatprep.subr.bf16.mxu0 0
        %1307 = vmatpush1.bf16.msra.mxu0 0
        %1308 = vmatprep.subr.bf16.mxu0 0
        %1309 = vmatpush1.bf16.msra.mxu0 0
        %1310 = vmatprep.subr.bf16.mxu0 0
        %1311 = vmatpush1.bf16.msra.mxu0 0
        %1312 = vmatprep.subr.bf16.mxu0 %v1033
        %1313 = vmatpush1.bf16.msra.mxu0 %v1032
        %1314 = vmatprep.subr.bf16.mxu0 0
        %1315 = vmatpush2.bf16.msra.mxu0 0
        %1316 = vmatprep.subr.bf16.mxu0 0
        %1317 = vmatpush2.bf16.msra.mxu0 0
        %1318 = vmatprep.subr.bf16.mxu0 0
        %1319 = vmatpush2.bf16.msra.mxu0 0
        %1320 = vmatprep.subr.bf16.mxu0 0
        %1321 = vmatpush2.bf16.msra.mxu0 0
        %1322 = vmatprep.subr.bf16.mxu0 0
        %1323 = vmatpush2.bf16.msra.mxu0 0
        %1324 = vmatprep.subr.bf16.mxu0 0
        %1325 = vmatpush2.bf16.msra.mxu0 0
        %1326 = vmatprep.subr.bf16.mxu0 0
        %1327 = vmatpush2.bf16.msra.mxu0 0
        %1328 = vmatprep.subr.bf16.mxu0 0
        %1329 = vmatpush2.bf16.msra.mxu0 0
        %1330 = vmatprep.mubr.bf16.mxu0 0
        %1331 = vmatmul.mubr.bf16.gmra.mxu0 %v1134
        %v1332 = vpop.f32.mrf.mxu0
        %v1333 = vadd.f32 %v1280, %v1332
        %v1334 = vpop.f32.mrf.mxu0
        %v1335 = vadd.f32 %v1282, %v1334
        %v1336 = vpop.f32.mrf.mxu0
        %v1337 = vadd.f32 %v1284, %v1336
        %v1338 = vpop.f32.mrf.mxu0
        %v1339 = vadd.f32 %v1286, %v1338
        %1340 = vmatprep.mubr.bf16.mxu0 0
        %1341 = vmatmul.mubr.bf16.gmra.mxu0 %v1137
        %v1342 = vpop.f32.mrf.mxu0
        %v1343 = vadd.f32 %v1290, %v1342
        %v1344 = vpop.f32.mrf.mxu0
        %v1345 = vadd.f32 %v1292, %v1344
        %v1346 = vpop.f32.mrf.mxu0
        %v1347 = vadd.f32 %v1294, %v1346
        %v1348 = vpop.f32.mrf.mxu0
        %v1349 = vadd.f32 %v1296, %v1348
        %1350 = vdwg.mxu0
        %v1351 = vld [vmem:[%s3] sm:$0x3]
        %v1352 = vld [vmem:[%s4] sm:$0x3]
        %vm1353 = vcmask 556032
        %v1354 = vsel %vm1353, %v1335, 0.0
        %v1355 = vadd.f32 %v1333, %v1354
        %1356 = vadd.xlane.f32.xlu0 %v1355
        %v1357 = vpop.xlane.xlu0 %1356
        %v1358 = vsel %vm1353, %v1339, 0.0
        %v1359 = vadd.f32 %v1337, %v1358
        %1360 = vadd.xlane.f32.xlu0 %v1359
        %v1361 = vpop.xlane.xlu0 %1360
        %v1362 = vsel %vm1353, %v1345, 0.0
        %v1363 = vadd.f32 %v1343, %v1362
        %1364 = vadd.xlane.f32.xlu0 %v1363
        %v1365 = vpop.xlane.xlu0 %1364
        %v1366 = vsel %vm1353, %v1349, 0.0
        %v1367 = vadd.f32 %v1347, %v1366
        %1368 = vadd.xlane.f32.xlu0 %v1367
        %v1369 = vpop.xlane.xlu0 %1368
        %v1370 = vmul.f32 %v1357, 0.0051020407
        %v1371 = vmul.f32 %v1361, 0.0051020407
        %v1372 = vmul.f32 %v1365, 0.0051020407
        %v1373 = vmul.f32 %v1369, 0.0051020407
        %v1374 = vsub.f32 %v1333, %v1370
        %v1375 = vsub.f32 %v1335, %v1370
        %v1376 = vsub.f32 %v1337, %v1371
        %v1377 = vsub.f32 %v1339, %v1371
        %v1378 = vsub.f32 %v1343, %v1372
        %v1379 = vsub.f32 %v1345, %v1372
        %v1380 = vsub.f32 %v1347, %v1373
        %v1381 = vsub.f32 %v1349, %v1373
        %v1382 = vmul.f32 %v1374, %v1374
        %v1383 = vmul.f32 %v1375, %v1375
        %v1384 = vmul.f32 %v1376, %v1376
        %v1385 = vmul.f32 %v1377, %v1377
        %v1386 = vmul.f32 %v1378, %v1378
        %v1387 = vmul.f32 %v1379, %v1379
        %v1388 = vmul.f32 %v1380, %v1380
        %v1389 = vmul.f32 %v1381, %v1381
        %v1390 = vsel %vm1353, %v1383, 0.0
        %v1391 = vadd.f32 %v1382, %v1390
        %1392 = vadd.xlane.f32.xlu0 %v1391
        %v1393 = vpop.xlane.xlu0 %1392
        %v1394 = vsel %vm1353, %v1385, 0.0
        %v1395 = vadd.f32 %v1384, %v1394
        %1396 = vadd.xlane.f32.xlu0 %v1395
        %v1397 = vpop.xlane.xlu0 %1396
        %v1398 = vsel %vm1353, %v1387, 0.0
        %v1399 = vadd.f32 %v1386, %v1398
        %1400 = vadd.xlane.f32.xlu0 %v1399
        %v1401 = vpop.xlane.xlu0 %1400
        %v1402 = vsel %vm1353, %v1389, 0.0
        %v1403 = vadd.f32 %v1388, %v1402
        %1404 = vadd.xlane.f32.xlu0 %v1403
        %v1405 = vpop.xlane.xlu0 %1404
        %v1406 = vmul.f32 %v1393, 0.0051020407
        %v1407 = vmul.f32 %v1397, 0.0051020407
        %v1408 = vmul.f32 %v1401, 0.0051020407
        %v1409 = vmul.f32 %v1405, 0.0051020407
        %v1410 = vadd.f32 %v1406, 1e-05
        %v1411 = vadd.f32 %v1407, 1e-05
        %v1412 = vadd.f32 %v1408, 1e-05
        %v1413 = vadd.f32 %v1409, 1e-05
        %v1414 = vrsqrt.pop %v1410
        %v1415 = vrsqrt.pop %v1411
        %v1416 = vrsqrt.pop %v1412
        %v1417 = vrsqrt.pop %v1413
        %v1418 = vmul.f32 %v1374, %v1414
        %v1419 = vmul.f32 %v1375, %v1414
        %v1420 = vmul.f32 %v1376, %v1415
        %v1421 = vmul.f32 %v1377, %v1415
        %v1422 = vmul.f32 %v1378, %v1416
        %v1423 = vmul.f32 %v1379, %v1416
        %v1424 = vmul.f32 %v1380, %v1417
        %v1425 = vmul.f32 %v1381, %v1417
        %v1427 = vlaneseq
        %v1428 = vshrl.u32 %v1427, 7
        %v1429 = vsub.s32 0, %v1428
        %v1430 = vrot.slane %v1351, %v1429
        %v1431 = vlaneseq
        %v1432 = vshrl.u32 %v1431, 7
        %v1433 = vsub.s32 1, %v1432
        %v1434 = vrot.slane %v1351, %v1433
        %v1437 = vmul.f32 %v1418, %v1430
        %v1438 = vmul.f32 %v1419, %v1434
        %v1439 = vmul.f32 %v1420, %v1430
        %v1440 = vmul.f32 %v1421, %v1434
        %v1441 = vmul.f32 %v1422, %v1430
        %v1442 = vmul.f32 %v1423, %v1434
        %v1443 = vmul.f32 %v1424, %v1430
        %v1444 = vmul.f32 %v1425, %v1434
        %v1446 = vlaneseq
        %v1447 = vshrl.u32 %v1446, 7
        %v1448 = vsub.s32 0, %v1447
        %v1449 = vrot.slane %v1352, %v1448
        %v1450 = vlaneseq
        %v1451 = vshrl.u32 %v1450, 7
        %v1452 = vsub.s32 1, %v1451
        %v1453 = vrot.slane %v1352, %v1452
        %v1456 = vadd.f32 %v1437, %v1449
        %v1457 = vadd.f32 %v1438, %v1453
        %v1458 = vadd.f32 %v1439, %v1449
        %v1459 = vadd.f32 %v1440, %v1453
        %v1460 = vadd.f32 %v1441, %v1449
        %v1461 = vadd.f32 %v1442, %v1453
        %v1462 = vadd.f32 %v1443, %v1449
        %v1463 = vadd.f32 %v1444, %v1453
        %v1464 = vmax.f32 %v1456, 0.0
        %v1465 = vmax.f32 %v1457, 0.0
        %v1466 = vmax.f32 %v1458, 0.0
        %v1467 = vmax.f32 %v1459, 0.0
        %v1468 = vmax.f32 %v1460, 0.0
        %v1469 = vmax.f32 %v1461, 0.0
        %v1470 = vmax.f32 %v1462, 0.0
        %v1471 = vmax.f32 %v1463, 0.0
        %v1472 = vpack.c.bf16 %v1466, %v1464
        %v1473 = vpack.c.bf16 %v1467, %v1465
        %v1474 = vpack.c.bf16 %v1470, %v1468
        %v1475 = vpack.c.bf16 %v1471, %v1469
        %v1476 = vld [vmem:[%s5] sm:$0xf]
        %v1477 = vld [vmem:[%s5 + $0x4] sm:$0xf]
        %v1478 = vld [vmem:[%s5 + $0x8] sm:$0xf]
        %v1479 = vld [vmem:[%s5 + $0xc] sm:$0xf]
        %v1480 = vld [vmem:[%s5 + $0x10] sm:$0xf]
        %v1481 = vld [vmem:[%s5 + $0x14] sm:$0xf]
        %v1482 = vld [vmem:[%s5 + $0x18] sm:$0xf]
        %v1483 = vld [vmem:[%s5 + $0x1c] sm:$0xf]
        %v1484 = vld [vmem:[%s5 + $0x20] sm:$0xf]
        %v1485 = vld [vmem:[%s5 + $0x24] sm:$0xf]
        %v1486 = vld [vmem:[%s5 + $0x28] sm:$0xf]
        %v1487 = vld [vmem:[%s5 + $0x2c] sm:$0xf]
        %v1488 = vld [vmem:[%s5 + $0x30] sm:$0xf]
        %v1489 = vld [vmem:[%s5 + $0x34] sm:$0xf]
        %v1490 = vld [vmem:[%s5 + $0x38] sm:$0xf]
        %v1491 = vld [vmem:[%s5 + $0x3c] sm:$0xf]
        %v1492 = vld [vmem:[%s5 + $0x40] sm:$0xf]
        %v1493 = vld [vmem:[%s5 + $0x44] sm:$0xf]
        %v1494 = vld [vmem:[%s5 + $0x48] sm:$0xf]
        %v1495 = vld [vmem:[%s5 + $0x4c] sm:$0xf]
        %v1496 = vld [vmem:[%s5 + $0x50] sm:$0xf]
        %v1497 = vld [vmem:[%s5 + $0x54] sm:$0xf]
        %v1498 = vld [vmem:[%s5 + $0x58] sm:$0xf]
        %v1499 = vld [vmem:[%s5 + $0x5c] sm:$0xf]
        %v1500 = vld [vmem:[%s5 + $0x60] sm:$0x3]
        %v1501 = vld [vmem:[%s6] sm:$0x1]
        %v1503 = vlaneseq
        %v1504 = vshrl.u32 %v1503, 7
        %v1505 = vsub.s32 0, %v1504
        %v1506 = vrot.slane %v1501, %v1505
        %v1533 = vunpack.c.l.b16 %v1476
        %v1534 = vunpack.c.l.b16 %v1477
        %v1535 = vunpack.c.l.b16 %v1478
        %v1536 = vunpack.c.l.b16 %v1479
        %v1537 = vunpack.c.l.b16 %v1480
        %v1538 = vunpack.c.l.b16 %v1481
        %v1539 = vunpack.c.l.b16 %v1482
        %v1540 = vunpack.c.l.b16 %v1483
        %v1541 = vunpack.c.l.b16 %v1484
        %v1542 = vunpack.c.l.b16 %v1485
        %v1543 = vunpack.c.l.b16 %v1486
        %v1544 = vunpack.c.l.b16 %v1487
        %v1545 = vunpack.c.l.b16 %v1488
        %v1546 = vunpack.c.l.b16 %v1489
        %v1547 = vunpack.c.l.b16 %v1490
        %v1548 = vunpack.c.l.b16 %v1491
        %v1549 = vunpack.c.l.b16 %v1492
        %v1550 = vunpack.c.l.b16 %v1493
        %v1551 = vunpack.c.l.b16 %v1494
        %v1552 = vunpack.c.l.b16 %v1495
        %v1553 = vunpack.c.l.b16 %v1496
        %v1554 = vunpack.c.l.b16 %v1497
        %v1555 = vunpack.c.l.b16 %v1498
        %v1556 = vunpack.c.l.b16 %v1499
        %v1557 = vunpack.c.l.b16 %v1500
        %v1558 = vpack.c.b16 %v1534, %v1533
        %v1559 = vpack.c.b16 %v1536, %v1535
        %v1560 = vpack.c.b16 %v1538, %v1537
        %v1561 = vpack.c.b16 %v1540, %v1539
        %v1562 = vpack.c.b16 %v1542, %v1541
        %v1563 = vpack.c.b16 %v1544, %v1543
        %v1564 = vpack.c.b16 %v1546, %v1545
        %v1565 = vpack.c.b16 %v1548, %v1547
        %v1566 = vpack.c.b16 %v1550, %v1549
        %v1567 = vpack.c.b16 %v1552, %v1551
        %v1568 = vpack.c.b16 %v1554, %v1553
        %v1569 = vpack.c.b16 %v1556, %v1555
        %v1570 = vpack.c.b16 %v1557, %v1557
        %v1584 = vsel %vm1353, %v1473, 0
        %v1587 = vsel %vm1353, %v1475, 0
        %vm1589 = vcmask 1041408
        %v1591 = vsel %vm1589, %v1570, 0
        %1593 = vmatprep.subr.bf16.mxu0 0
        %1594 = vmatpush1.bf16.msra.mxu0 %v1565
        %1595 = vmatprep.subr.bf16.mxu0 0
        %1596 = vmatpush1.bf16.msra.mxu0 %v1564
        %1597 = vmatprep.subr.bf16.mxu0 0
        %1598 = vmatpush1.bf16.msra.mxu0 %v1563
        %1599 = vmatprep.subr.bf16.mxu0 0
        %1600 = vmatpush1.bf16.msra.mxu0 %v1562
        %1601 = vmatprep.subr.bf16.mxu0 0
        %1602 = vmatpush1.bf16.msra.mxu0 %v1561
        %1603 = vmatprep.subr.bf16.mxu0 0
        %1604 = vmatpush1.bf16.msra.mxu0 %v1560
        %1605 = vmatprep.subr.bf16.mxu0 0
        %1606 = vmatpush1.bf16.msra.mxu0 %v1559
        %1607 = vmatprep.subr.bf16.mxu0 0
        %1608 = vmatpush1.bf16.msra.mxu0 %v1558
        %1609 = vmatprep.subr.bf16.mxu0 0
        %1610 = vmatpush2.bf16.msra.mxu0 0
        %1611 = vmatprep.subr.bf16.mxu0 0
        %1612 = vmatpush2.bf16.msra.mxu0 0
        %1613 = vmatprep.subr.bf16.mxu0 0
        %1614 = vmatpush2.bf16.msra.mxu0 0
        %1615 = vmatprep.subr.bf16.mxu0 0
        %1616 = vmatpush2.bf16.msra.mxu0 %v1591
        %1617 = vmatprep.subr.bf16.mxu0 0
        %1618 = vmatpush2.bf16.msra.mxu0 %v1569
        %1619 = vmatprep.subr.bf16.mxu0 0
        %1620 = vmatpush2.bf16.msra.mxu0 %v1568
        %1621 = vmatprep.subr.bf16.mxu0 0
        %1622 = vmatpush2.bf16.msra.mxu0 %v1567
        %1623 = vmatprep.subr.bf16.mxu0 0
        %1624 = vmatpush2.bf16.msra.mxu0 %v1566
        %1625 = vmatprep.mubr.bf16.mxu0 %v1584
        %1626 = vmatmul.mubr.bf16.gmra.mxu0 %v1472
        %v1627 = vpop.f32.mrf.mxu0
        %v1628 = vadd.f32 %v1506, %v1627
        %v1629 = vpop.f32.mrf.mxu0
        %v1630 = vpop.f32.mrf.mxu0
        %v1631 = vadd.f32 %v1506, %v1630
        %v1632 = vpop.f32.mrf.mxu0
        %1633 = vmatprep.mubr.bf16.mxu0 %v1587
        %1634 = vmatmul.mubr.bf16.gmra.mxu0 %v1474
        %v1635 = vpop.f32.mrf.mxu0
        %v1636 = vadd.f32 %v1506, %v1635
        %v1637 = vpop.f32.mrf.mxu0
        %v1638 = vpop.f32.mrf.mxu0
        %v1639 = vadd.f32 %v1506, %v1638
        %v1640 = vpop.f32.mrf.mxu0
        %1641 = vdwg.mxu0
        %v1642 = vld [vmem:[%s7] sm:$0x1]
        %v1643 = vld [vmem:[%s8] sm:$0x1]
        %vm1644 = vcmask 261120
        %v1645 = vsel %vm1644, %v1628, 0.0
        %1646 = vadd.xlane.f32.xlu0 %v1645
        %v1647 = vpop.xlane.xlu0 %1646
        %v1648 = vsel %vm1644, %v1631, 0.0
        %1649 = vadd.xlane.f32.xlu0 %v1648
        %v1650 = vpop.xlane.xlu0 %1649
        %v1651 = vsel %vm1644, %v1636, 0.0
        %1652 = vadd.xlane.f32.xlu0 %v1651
        %v1653 = vpop.xlane.xlu0 %1652
        %v1654 = vsel %vm1644, %v1639, 0.0
        %1655 = vadd.xlane.f32.xlu0 %v1654
        %v1656 = vpop.xlane.xlu0 %1655
        %v1657 = vmul.f32 %v1647, 0.03125
        %v1658 = vmul.f32 %v1650, 0.03125
        %v1659 = vmul.f32 %v1653, 0.03125
        %v1660 = vmul.f32 %v1656, 0.03125
        %v1661 = vsub.f32 %v1628, %v1657
        %v1662 = vsub.f32 %v1631, %v1658
        %v1663 = vsub.f32 %v1636, %v1659
        %v1664 = vsub.f32 %v1639, %v1660
        %v1665 = vmul.f32 %v1661, %v1661
        %v1666 = vmul.f32 %v1662, %v1662
        %v1667 = vmul.f32 %v1663, %v1663
        %v1668 = vmul.f32 %v1664, %v1664
        %v1669 = vsel %vm1644, %v1665, 0.0
        %1670 = vadd.xlane.f32.xlu0 %v1669
        %v1671 = vpop.xlane.xlu0 %1670
        %v1672 = vsel %vm1644, %v1666, 0.0
        %1673 = vadd.xlane.f32.xlu0 %v1672
        %v1674 = vpop.xlane.xlu0 %1673
        %v1675 = vsel %vm1644, %v1667, 0.0
        %1676 = vadd.xlane.f32.xlu0 %v1675
        %v1677 = vpop.xlane.xlu0 %1676
        %v1678 = vsel %vm1644, %v1668, 0.0
        %1679 = vadd.xlane.f32.xlu0 %v1678
        %v1680 = vpop.xlane.xlu0 %1679
        %v1681 = vmul.f32 %v1671, 0.03125
        %v1682 = vmul.f32 %v1674, 0.03125
        %v1683 = vmul.f32 %v1677, 0.03125
        %v1684 = vmul.f32 %v1680, 0.03125
        %v1685 = vadd.f32 %v1681, 1e-05
        %v1686 = vadd.f32 %v1682, 1e-05
        %v1687 = vadd.f32 %v1683, 1e-05
        %v1688 = vadd.f32 %v1684, 1e-05
        %v1689 = vrsqrt.pop %v1685
        %v1690 = vrsqrt.pop %v1686
        %v1691 = vrsqrt.pop %v1687
        %v1692 = vrsqrt.pop %v1688
        %v1693 = vmul.f32 %v1661, %v1689
        %v1694 = vmul.f32 %v1662, %v1690
        %v1695 = vmul.f32 %v1663, %v1691
        %v1696 = vmul.f32 %v1664, %v1692
        %v1698 = vlaneseq
        %v1699 = vshrl.u32 %v1698, 7
        %v1700 = vsub.s32 0, %v1699
        %v1701 = vrot.slane %v1642, %v1700
        %v1703 = vmul.f32 %v1693, %v1701
        %v1704 = vmul.f32 %v1694, %v1701
        %v1705 = vmul.f32 %v1695, %v1701
        %v1706 = vmul.f32 %v1696, %v1701
        %v1708 = vlaneseq
        %v1709 = vshrl.u32 %v1708, 7
        %v1710 = vsub.s32 0, %v1709
        %v1711 = vrot.slane %v1643, %v1710
        %v1713 = vadd.f32 %v1703, %v1711
        %v1714 = vadd.f32 %v1704, %v1711
        %v1715 = vadd.f32 %v1705, %v1711
        %v1716 = vadd.f32 %v1706, %v1711
        %v1717 = vmax.f32 %v1713, 0.0
        %v1718 = vmax.f32 %v1714, 0.0
        %v1719 = vmax.f32 %v1715, 0.0
        %v1720 = vmax.f32 %v1716, 0.0
        %v1721 = vpack.c.bf16 %v1718, %v1717
        %v1722 = vpack.c.bf16 %v1720, %v1719
        %v1723 = vld [vmem:[%s9] sm:$0xf]
        %v1724 = vld [vmem:[%s9 + $0x4] sm:$0xf]
        %v1725 = vld [vmem:[%s9 + $0x8] sm:$0xf]
        %v1726 = vld [vmem:[%s9 + $0xc] sm:$0xf]
        %v1727 = vld [vmem:[%s10] sm:$0x1]
        %v1729 = vlaneseq
        %v1730 = vshrl.u32 %v1729, 7
        %v1731 = vsub.s32 0, %v1730
        %v1732 = vrot.slane %v1727, %v1731
        %v1738 = vunpack.c.l.b16 %v1723
        %v1739 = vunpack.c.l.b16 %v1724
        %v1740 = vunpack.c.l.b16 %v1725
        %v1741 = vunpack.c.l.b16 %v1726
        %v1742 = vpack.c.b16 %v1739, %v1738
        %v1743 = vpack.c.b16 %v1741, %v1740
        %v1747 = vsel %vm1644, %v1721, 0
        %v1750 = vsel %vm1644, %v1722, 0
        %1752 = vmatprep.subr.bf16.mxu0 0
        %1753 = vmatpush1.bf16.msra.mxu0 0
        %1754 = vmatprep.subr.bf16.mxu0 0
        %1755 = vmatpush1.bf16.msra.mxu0 0
        %1756 = vmatprep.subr.bf16.mxu0 0
        %1757 = vmatpush1.bf16.msra.mxu0 0
        %1758 = vmatprep.subr.bf16.mxu0 0
        %1759 = vmatpush1.bf16.msra.mxu0 0
        %1760 = vmatprep.subr.bf16.mxu0 0
        %1761 = vmatpush1.bf16.msra.mxu0 0
        %1762 = vmatprep.subr.bf16.mxu0 0
        %1763 = vmatpush1.bf16.msra.mxu0 0
        %1764 = vmatprep.subr.bf16.mxu0 0
        %1765 = vmatpush1.bf16.msra.mxu0 %v1743
        %1766 = vmatprep.subr.bf16.mxu0 0
        %1767 = vmatpush1.bf16.msra.mxu0 %v1742
        %1768 = vmatprep.subr.bf16.mxu0 0
        %1769 = vmatpush2.bf16.msra.mxu0 0
        %1770 = vmatprep.subr.bf16.mxu0 0
        %1771 = vmatpush2.bf16.msra.mxu0 0
        %1772 = vmatprep.subr.bf16.mxu0 0
        %1773 = vmatpush2.bf16.msra.mxu0 0
        %1774 = vmatprep.subr.bf16.mxu0 0
        %1775 = vmatpush2.bf16.msra.mxu0 0
        %1776 = vmatprep.subr.bf16.mxu0 0
        %1777 = vmatpush2.bf16.msra.mxu0 0
        %1778 = vmatprep.subr.bf16.mxu0 0
        %1779 = vmatpush2.bf16.msra.mxu0 0
        %1780 = vmatprep.subr.bf16.mxu0 0
        %1781 = vmatpush2.bf16.msra.mxu0 0
        %1782 = vmatprep.subr.bf16.mxu0 0
        %1783 = vmatpush2.bf16.msra.mxu0 0
        %1784 = vmatprep.mubr.bf16.mxu0 0
        %1785 = vmatmul.mubr.bf16.gmra.mxu0 %v1747
        %v1786 = vpop.f32.mrf.mxu0
        %v1787 = vadd.f32 %v1732, %v1786
        %v1788 = vpop.f32.mrf.mxu0
        %v1789 = vpop.f32.mrf.mxu0
        %v1790 = vadd.f32 %v1732, %v1789
        %v1791 = vpop.f32.mrf.mxu0
        %1792 = vmatprep.mubr.bf16.mxu0 0
        %1793 = vmatmul.mubr.bf16.gmra.mxu0 %v1750
        %v1794 = vpop.f32.mrf.mxu0
        %v1795 = vadd.f32 %v1732, %v1794
        %v1796 = vpop.f32.mrf.mxu0
        %v1797 = vpop.f32.mrf.mxu0
        %v1798 = vadd.f32 %v1732, %v1797
        %v1799 = vpop.f32.mrf.mxu0
        %1800 = vdwg.mxu0
        %1801 = vadd.xlane.f32.xlu0 %v1787
        %v1802 = vpop.xlane.xlu0 %1801
        %1803 = vadd.xlane.f32.xlu0 %v1790
        %v1804 = vpop.xlane.xlu0 %1803
        %1805 = vadd.xlane.f32.xlu0 %v1795
        %v1806 = vpop.xlane.xlu0 %1805
        %1807 = vadd.xlane.f32.xlu0 %v1798
        %v1808 = vpop.xlane.xlu0 %1807
        %v1809 = vmul.f32 %v1802, 0.1
        %v1810 = vmul.f32 %v1804, 0.1
        %v1811 = vmul.f32 %v1806, 0.1
        %v1812 = vmul.f32 %v1808, 0.1
        %v1813 = vsub.f32 %v1787, %v1809
        %v1814 = vsub.f32 %v1790, %v1810
        %v1815 = vsub.f32 %v1795, %v1811
        %v1816 = vsub.f32 %v1798, %v1812
        %v1817 = vlaneseq
        %v1818 = vand.u32 %v1817, 127
        %vm1819 = vcmp.lt.s32.totalorder %v1818, 10
        %v1820 = vmul.f32 %v1813, %v1813
        %v1821 = vmul.f32 %v1814, %v1814
        %v1822 = vmul.f32 %v1815, %v1815
        %v1823 = vmul.f32 %v1816, %v1816
        %v1824 = vsel %vm1819, %v1820, 0.0
        %v1825 = vsel %vm1819, %v1821, 0.0
        %v1826 = vsel %vm1819, %v1822, 0.0
        %v1827 = vsel %vm1819, %v1823, 0.0
        %1828 = vadd.xlane.f32.xlu0 %v1824
        %v1829 = vpop.xlane.xlu0 %1828
        %1830 = vadd.xlane.f32.xlu0 %v1825
        %v1831 = vpop.xlane.xlu0 %1830
        %1832 = vadd.xlane.f32.xlu0 %v1826
        %v1833 = vpop.xlane.xlu0 %1832
        %1834 = vadd.xlane.f32.xlu0 %v1827
        %v1835 = vpop.xlane.xlu0 %1834
        %v1836 = vmul.f32 %v1829, 0.1
        %v1837 = vmul.f32 %v1831, 0.1
        %v1838 = vmul.f32 %v1833, 0.1
        %v1839 = vmul.f32 %v1835, 0.1
        %v1840 = vadd.f32 %v1836, 1e-05
        %v1841 = vadd.f32 %v1837, 1e-05
        %v1842 = vadd.f32 %v1838, 1e-05
        %v1843 = vadd.f32 %v1839, 1e-05
        %v1844 = vrsqrt.pop %v1840
        %v1845 = vrsqrt.pop %v1841
        %v1846 = vrsqrt.pop %v1842
        %v1847 = vrsqrt.pop %v1843
        %v1848 = vmul.f32 %v1813, %v1844
        %v1849 = vmul.f32 %v1814, %v1845
        %v1850 = vmul.f32 %v1815, %v1846
        %v1851 = vmul.f32 %v1816, %v1847
        %v1852 = vld [vmem:[%s11] sm:$0x1]
        %v1854 = vlaneseq
        %v1855 = vshrl.u32 %v1854, 7
        %v1856 = vsub.s32 0, %v1855
        %v1857 = vrot.slane %v1852, %v1856
        %v1859 = vmul.f32 %v1848, %v1857
        %v1860 = vmul.f32 %v1849, %v1857
        %v1861 = vmul.f32 %v1850, %v1857
        %v1862 = vmul.f32 %v1851, %v1857
        %v1863 = vld [vmem:[%s12] sm:$0x1]
        %v1865 = vlaneseq
        %v1866 = vshrl.u32 %v1865, 7
        %v1867 = vsub.s32 0, %v1866
        %v1868 = vrot.slane %v1863, %v1867
        %v1870 = vadd.f32 %v1859, %v1868
        %v1871 = vadd.f32 %v1860, %v1868
        %v1872 = vadd.f32 %v1861, %v1868
        %v1873 = vadd.f32 %v1862, %v1868
        %1874 = vst [vmem:[%s436] sm:$0xff] %v1870
        %1875 = vst [vmem:[%s436 + $0x8] sm:$0xff] %v1871
        %1876 = vst [vmem:[%s436 + $0x10] sm:$0xff] %v1872
        %1877 = vst [vmem:[%s436 + $0x18] sm:$0xff] %v1873
        %s1878 = sand.u32 %s313, 1
        %s1879 = scalar_lea.sflag [#allocation3], %s1878
        %s1880 = sand.u32 %s313, 1
        %s1881 = smul.addr %s1880, 32
        %s1882 = scalar_lea.vmem [#allocation2], %s1881
        // Predicated region
        $region73: #{tpu_custom_call.1} parent=71 // pred_check
          %p1883 = pneg %p323
        $region74: #{tpu_custom_call.1} parent=71 // pred_check_branch
          %1885 = sbr.rel (%p1883) target = $region76
        $region75: #{tpu_custom_call.1} parent=71 // pred_region
          %s1886 = smul.u32 4, %s27
          %s1888 = ssub.s32 512, 512
          %1889 = vsyncadd %s1879, %s1888
          %s1890 = smul.addr %s1886, 128
          %s1891 = scalar_lea.hbm %s13, %s1890
          %s1892 = sshll.u32 %s1882, 4
          %s1893 = int_to_ptr.vmem [resolvable:$true] %s1892
          %1898 = dma.vmem_to_hbm [thread:$0]  %s1893, 512, %s1891, %s1879, 128, 128, 8
        $region76: #{tpu_custom_call.1} parent=71 // pred_fallthru
          _
      $region72: #{tpu_custom_call.1} parent=5 // pred_fallthru
        _
      %p1899 = scmp.le.s32.totalorder 2, %s22
      // Predicated region
      $region77: #{tpu_custom_call.1} parent=5 // pred_check
        %p1900 = pneg %p1899
      $region78: #{tpu_custom_call.1} parent=5 // pred_check_branch
        %1902 = sbr.rel (%p1900) target = $region80
      $region79: #{tpu_custom_call.1} parent=5 // pred_region
        %s1903 = ssub.s32 %s22, 2
        // Predicated region
        $region81: #{tpu_custom_call.1} parent=79 // pred_check
          %p1904 = pneg %p329
        $region82: #{tpu_custom_call.1} parent=79 // pred_check_branch
          %1906 = sbr.rel (%p1904) target = $region84
        $region83: #{tpu_custom_call.1} parent=79 // pred_region
          %s1907 = sand.u32 %s314, 1
          %s1908 = scalar_lea.sflag [#allocation3], %s1907
          %s1909 = sand.u32 %s314, 1
          %s1910 = smul.addr %s1909, 32
          %s1911 = scalar_lea.vmem [#allocation2], %s1910
          %1912 = dma.done %s1908, 512
        $region84: #{tpu_custom_call.1} parent=79 // pred_fallthru
          _
      $region80: #{tpu_custom_call.1} parent=5 // pred_fallthru
        _
    $region6: #{tpu_custom_call.1} parent=1 // loop_footer
      %s26 = sadd.s32 1, %s22
    $region7: #{tpu_custom_call.1} parent=1 // loop_footer_branch
      %21 = sbr.rel target = $region3
    $region8: #{tpu_custom_call.1} parent=1 // loop_exit
      _
    %1913 = vsyncpa [#allocation3], 1
    %s1914 = scalar_lea.sflag [#allocation3], 1
    %1915 = vsyncpa %s1914, 1

</llo_original>
